<compile_context>
chip_gen: v7x
topology: tpu7x:2x2x1
jax: 0.10.0
libtpu: 0.0.40
codegen_flags: <defaults>
</compile_context>

<pallas_src>
import functools

import jax
import jax.numpy as jnp
from jax.experimental import pallas as pl
from jax.experimental.pallas import tpu as pltpu

LEAKY_SLOPE = 0.01  # PyTorch F.leaky_relu default
BN_EPS = 1e-5       # PyTorch BatchNorm1d default

D_IN, D1, D2, D3, D_OUT = 768, 256, 128, 64, 8
D3_PAD = 128        # lane-dense padded hidden-3 width
D_OUT_PAD = 128     # lane-dense padded logits width


def mlp_kernel(x_ref,
               w1_ref, b1_ref,
               w2_ref, b2_ref,
               w3_ref, b3_ref,
               w4_ref, b4_ref,
               o_ref):
    """Fused 4-layer MLP (BN folded into weights) on one batch tile."""
    w1 = w1_ref[...]
    cdt = w1.dtype  # MXU compute dtype (f32 or bf16); epilogue stays f32.

    # layer 1: fc1 (+folded bn1) + leaky_relu   (dropout == identity in eval)
    h = jnp.dot(x_ref[...].astype(cdt), w1,
                preferred_element_type=jnp.float32) + b1_ref[...]
    h = jnp.maximum(h, LEAKY_SLOPE * h)

    # layer 2
    h = jnp.dot(h.astype(cdt), w2_ref[...],
                preferred_element_type=jnp.float32) + b2_ref[...]
    h = jnp.maximum(h, LEAKY_SLOPE * h)

    # layer 3 (output padded to 128 lanes; padded cols are exactly 0)
    h = jnp.dot(h.astype(cdt), w3_ref[...],
                preferred_element_type=jnp.float32) + b3_ref[...]
    h = jnp.maximum(h, LEAKY_SLOPE * h)

    # layer 4: logits (padded to 128 lanes for a dense, unmasked store)
    o_ref[...] = (jnp.dot(h.astype(cdt), w4_ref[...],
                          preferred_element_type=jnp.float32)
                  + b4_ref[...]).astype(o_ref.dtype)


def _const_spec(shape):
    # whole-array block, same block at every grid step (grid-invariant weights)
    return pl.BlockSpec(shape, lambda i: tuple(0 for _ in shape))


@functools.partial(jax.jit, static_argnames=("block_b",))
def improved_eight_class_forward(x, folded_params, block_b=512):
    """x: (B, 768) f32, folded_params from fold_params() -> logits (B, 8) f32."""
    B = x.shape[0]
    w1, b1, w2, b2, w3, b3, w4, b4 = folded_params

    # Pad batch to a multiple of the tile so any B works.
    n_blocks = pl.cdiv(B, block_b)
    padded_B = n_blocks * block_b
    if padded_B != B:
        x = jnp.pad(x, ((0, padded_B - B), (0, 0)))

    grid = (n_blocks,)

    in_specs = [
        pl.BlockSpec((block_b, D_IN), lambda i: (i, 0)),   # x tile
        _const_spec(w1.shape), _const_spec(b1.shape),
        _const_spec(w2.shape), _const_spec(b2.shape),
        _const_spec(w3.shape), _const_spec(b3.shape),
        _const_spec(w4.shape), _const_spec(b4.shape),
    ]
    out_spec = pl.BlockSpec((block_b, D_OUT_PAD), lambda i: (i, 0))

    w_bytes = sum(int(a.size) * a.dtype.itemsize
                  for a in (w1, b1, w2, b2, w3, b3, w4, b4))
    flops = 2 * padded_B * (D_IN * D1 + D1 * D2 + D2 * D3_PAD + D3_PAD * D_OUT_PAD)
    cost = pl.CostEstimate(
        flops=flops,
        transcendentals=0,
        bytes_accessed=padded_B * D_IN * 4 + w_bytes + padded_B * D_OUT_PAD * 4,
    )

    out = pl.pallas_call(
        mlp_kernel,
        out_shape=jax.ShapeDtypeStruct((padded_B, D_OUT_PAD), jnp.float32),
        grid=grid,
        in_specs=in_specs,
        out_specs=out_spec,
        compiler_params=pltpu.CompilerParams(
            dimension_semantics=("parallel",),
            vmem_limit_bytes=32 * 1024 * 1024,
        ),
        cost_estimate=cost,
    )(x, w1, b1, w2, b2, w3, b3, w4, b4)

    return out[:B, :D_OUT]


def fold_params(params, use_bf16=False):
    """Fold inference BatchNorm into the linear weights/biases and zero-pad the
    narrow dims (hidden-3 and logits) to a lane-dense 128.

    W' = W * s (per output feature), b' = b * s + t. Weights optionally cast to
    bf16 for the MXU (v6e/v7x); biases stay f32 (f32 epilogue)."""
    (w1, b1, s1, t1,
     w2, b2, s2, t2,
     w3, b3, s3, t3,
     w4, b4) = params

    def fold(w, b, s, t):
        return w * s, b * s + t

    w1f, b1f = fold(w1, b1, s1, t1)
    w2f, b2f = fold(w2, b2, s2, t2)
    w3f, b3f = fold(w3, b3, s3, t3)

    # Pad layer 3 output to 128 lanes (zero cols / zero bias -> padded
    # activations are exactly 0 after LeakyReLU).
    w3p = jnp.pad(w3f, ((0, 0), (0, D3_PAD - D3)))
    b3p = jnp.pad(b3f, ((0, 0), (0, D3_PAD - D3)))

    # Pad layer 4 to a 128x128 block: zero input rows (match padded hidden-3)
    # and zero output cols (wrapper slices [:, :8]).
    w4p = jnp.pad(w4, ((0, D3_PAD - D3), (0, D_OUT_PAD - D_OUT)))
    b4p = jnp.pad(b4, ((0, 0), (0, D_OUT_PAD - D_OUT)))

    wdt = jnp.bfloat16 if use_bf16 else jnp.float32
    return (w1f.astype(wdt), b1f.astype(jnp.float32),
            w2f.astype(wdt), b2f.astype(jnp.float32),
            w3p.astype(wdt), b3p.astype(jnp.float32),
            w4p.astype(wdt), b4p.astype(jnp.float32))


def init_params(key):
    """Deterministic parameter init mimicking PyTorch defaults (eval mode).

    Linear: weight, bias ~ U(-1/sqrt(fan_in), 1/sqrt(fan_in)), stored (in, out).
    BatchNorm1d: gamma=1, beta=0, running_mean=0, running_var=1 -> per-feature
    inference scale/shift (s, t)."""
    def linear(key, fan_in, fan_out):
        kw, kb = jax.random.split(key)
        bound = 1.0 / jnp.sqrt(jnp.float32(fan_in))
        w = jax.random.uniform(kw, (fan_in, fan_out), jnp.float32, -bound, bound)
        b = jax.random.uniform(kb, (1, fan_out), jnp.float32, -bound, bound)
        return w, b

    def bn_fold(num_features):
        gamma = jnp.ones((1, num_features), jnp.float32)
        beta = jnp.zeros((1, num_features), jnp.float32)
        running_mean = jnp.zeros((1, num_features), jnp.float32)
        running_var = jnp.ones((1, num_features), jnp.float32)
        scale = gamma / jnp.sqrt(running_var + BN_EPS)
        shift = beta - running_mean * scale
        return scale, shift

    k1, k2, k3, k4 = jax.random.split(key, 4)
    w1, b1 = linear(k1, D_IN, D1)
    w2, b2 = linear(k2, D1, D2)
    w3, b3 = linear(k3, D2, D3)
    w4, b4 = linear(k4, D3, D_OUT)
    s1, t1 = bn_fold(D1)
    s2, t2 = bn_fold(D2)
    s3, t3 = bn_fold(D3)
    return (w1, b1, s1, t1, w2, b2, s2, t2, w3, b3, s3, t3, w4, b4)


def reference_forward(x, params):
    """Plain-JAX reference (unfolded BN, eval-mode dropout=identity)."""
    (w1, b1, s1, t1, w2, b2, s2, t2, w3, b3, s3, t3, w4, b4) = params

    def lrelu(v):
        return jnp.maximum(v, LEAKY_SLOPE * v)

    h = lrelu((x @ w1 + b1) * s1 + t1)
    h = lrelu((h @ w2 + b2) * s2 + t2)
    h = lrelu((h @ w3 + b3) * s3 + t3)
    return h @ w4 + b4


if __name__ == "__main__":
    key = jax.random.PRNGKey(0)
    k_params, k_x = jax.random.split(key)

    raw_params = init_params(k_params)

    B = 200  # small, ragged batch (not a multiple of the tile -> exercises padding)
    x = jax.random.normal(k_x, (B, D_IN), jnp.float32)

    ref = reference_forward(x, raw_params)

    # f32 path (exact vs. reference up to fold rounding)
    params_f32 = fold_params(raw_params, use_bf16=False)
    out = jax.block_until_ready(
        improved_eight_class_forward(x, params_f32, block_b=128))
    assert out.shape == (B, D_OUT)
    assert jnp.allclose(out, ref, atol=1e-4, rtol=1e-4), "f32 mismatch vs reference"

    # bf16-MXU path (v6e/v7x fast path; f32 accumulation + f32 epilogue)
    params_bf16 = fold_params(raw_params, use_bf16=True)
    out_bf16 = jax.block_until_ready(
        improved_eight_class_forward(x, params_bf16, block_b=128))
    assert out_bf16.shape == (B, D_OUT)
    assert jnp.allclose(out_bf16, ref, atol=1e-1, rtol=1e-1), "bf16 mismatch vs reference"

    print("KERNEL_OK")
</pallas_src>

<mosaic_0001>
module attributes {stable_mosaic.version = 11 : i64} {
  func.func @mlp_kernel(%arg0: i32, %arg1: memref<128x768xf32, #tpu.memory_space<vmem>>, %arg2: memref<768x256xf32, #tpu.memory_space<vmem>>, %arg3: memref<1x256xf32, #tpu.memory_space<vmem>>, %arg4: memref<256x128xf32, #tpu.memory_space<vmem>>, %arg5: memref<1x128xf32, #tpu.memory_space<vmem>>, %arg6: memref<128x128xf32, #tpu.memory_space<vmem>>, %arg7: memref<1x128xf32, #tpu.memory_space<vmem>>, %arg8: memref<128x128xf32, #tpu.memory_space<vmem>>, %arg9: memref<1x128xf32, #tpu.memory_space<vmem>>, %arg10: memref<128x128xf32, #tpu.memory_space<vmem>>) attributes {dimension_semantics = [#tpu.dimension_semantics<parallel>], iteration_bounds = array<i64: 2>, scalar_prefetch = 0 : i64, scratch_operands = 0 : i64, tpu.core_type = #tpu.core_type<tc>, window_params = [{transform_indices = @transform_0, window_bounds = array<i64: 128, 768>}, {pipeline_mode = #tpu.pipeline_mode<synchronous>, transform_indices = @transform_1, window_bounds = array<i64: 768, 256>}, {pipeline_mode = #tpu.pipeline_mode<synchronous>, transform_indices = @transform_2, window_bounds = array<i64: 1, 256>}, {pipeline_mode = #tpu.pipeline_mode<synchronous>, transform_indices = @transform_3, window_bounds = array<i64: 256, 128>}, {pipeline_mode = #tpu.pipeline_mode<synchronous>, transform_indices = @transform_4, window_bounds = array<i64: 1, 128>}, {pipeline_mode = #tpu.pipeline_mode<synchronous>, transform_indices = @transform_5, window_bounds = array<i64: 128, 128>}, {pipeline_mode = #tpu.pipeline_mode<synchronous>, transform_indices = @transform_6, window_bounds = array<i64: 1, 128>}, {pipeline_mode = #tpu.pipeline_mode<synchronous>, transform_indices = @transform_7, window_bounds = array<i64: 128, 128>}, {pipeline_mode = #tpu.pipeline_mode<synchronous>, transform_indices = @transform_8, window_bounds = array<i64: 1, 128>}, {transform_indices = @transform_9, window_bounds = array<i64: 128, 128>}]} {
    %c0 = arith.constant 0 : index
    %c0_0 = arith.constant 0 : index
    %0 = vector.load %arg2[%c0, %c0_0] : memref<768x256xf32, #tpu.memory_space<vmem>>, vector<768x256xf32>
    %c0_1 = arith.constant 0 : index
    %c0_2 = arith.constant 0 : index
    %1 = vector.load %arg1[%c0_1, %c0_2] : memref<128x768xf32, #tpu.memory_space<vmem>>, vector<128x768xf32>
    %cst = arith.constant dense<0.000000e+00> : vector<128x256xf32>
    %2 = tpu.matmul %1, %0, %cst {dimension_numbers = #tpu.dot_dimension_numbers<[1], [0], [0], [1], [0, 0, 1, 1], [], []>} : vector<128x768xf32>, vector<768x256xf32>, vector<128x256xf32> -> vector<128x256xf32>
    %c0_3 = arith.constant 0 : index
    %c0_4 = arith.constant 0 : index
    %3 = vector.load %arg3[%c0_3, %c0_4] : memref<1x256xf32, #tpu.memory_space<vmem>>, vector<1x256xf32>
    %4 = vector.broadcast %3 : vector<1x256xf32> to vector<128x256xf32>
    %5 = arith.addf %2, %4 : vector<128x256xf32>
    %cst_5 = arith.constant 0.00999999977 : f32
    %6 = vector.broadcast %cst_5 : f32 to vector<128x256xf32>
    %7 = arith.mulf %6, %5 : vector<128x256xf32>
    %8 = arith.maximumf %5, %7 : vector<128x256xf32>
    %c0_6 = arith.constant 0 : index
    %c0_7 = arith.constant 0 : index
    %9 = vector.load %arg4[%c0_6, %c0_7] : memref<256x128xf32, #tpu.memory_space<vmem>>, vector<256x128xf32>
    %cst_8 = arith.constant dense<0.000000e+00> : vector<128x128xf32>
    %10 = tpu.matmul %8, %9, %cst_8 {dimension_numbers = #tpu.dot_dimension_numbers<[1], [0], [0], [1], [0, 0, 1, 1], [], []>} : vector<128x256xf32>, vector<256x128xf32>, vector<128x128xf32> -> vector<128x128xf32>
    %c0_9 = arith.constant 0 : index
    %c0_10 = arith.constant 0 : index
    %11 = vector.load %arg5[%c0_9, %c0_10] : memref<1x128xf32, #tpu.memory_space<vmem>>, vector<1x128xf32>
    %12 = vector.broadcast %11 : vector<1x128xf32> to vector<128x128xf32>
    %13 = arith.addf %10, %12 : vector<128x128xf32>
    %cst_11 = arith.constant 0.00999999977 : f32
    %14 = vector.broadcast %cst_11 : f32 to vector<128x128xf32>
    %15 = arith.mulf %14, %13 : vector<128x128xf32>
    %16 = arith.maximumf %13, %15 : vector<128x128xf32>
    %c0_12 = arith.constant 0 : index
    %c0_13 = arith.constant 0 : index
    %17 = vector.load %arg6[%c0_12, %c0_13] : memref<128x128xf32, #tpu.memory_space<vmem>>, vector<128x128xf32>
    %cst_14 = arith.constant dense<0.000000e+00> : vector<128x128xf32>
    %18 = tpu.matmul %16, %17, %cst_14 {dimension_numbers = #tpu.dot_dimension_numbers<[1], [0], [0], [1], [0, 0, 1, 1], [], []>} : vector<128x128xf32>, vector<128x128xf32>, vector<128x128xf32> -> vector<128x128xf32>
    %c0_15 = arith.constant 0 : index
    %c0_16 = arith.constant 0 : index
    %19 = vector.load %arg7[%c0_15, %c0_16] : memref<1x128xf32, #tpu.memory_space<vmem>>, vector<1x128xf32>
    %20 = vector.broadcast %19 : vector<1x128xf32> to vector<128x128xf32>
    %21 = arith.addf %18, %20 : vector<128x128xf32>
    %cst_17 = arith.constant 0.00999999977 : f32
    %22 = vector.broadcast %cst_17 : f32 to vector<128x128xf32>
    %23 = arith.mulf %22, %21 : vector<128x128xf32>
    %24 = arith.maximumf %21, %23 : vector<128x128xf32>
    %c0_18 = arith.constant 0 : index
    %c0_19 = arith.constant 0 : index
    %25 = vector.load %arg8[%c0_18, %c0_19] : memref<128x128xf32, #tpu.memory_space<vmem>>, vector<128x128xf32>
    %cst_20 = arith.constant dense<0.000000e+00> : vector<128x128xf32>
    %26 = tpu.matmul %24, %25, %cst_20 {dimension_numbers = #tpu.dot_dimension_numbers<[1], [0], [0], [1], [0, 0, 1, 1], [], []>} : vector<128x128xf32>, vector<128x128xf32>, vector<128x128xf32> -> vector<128x128xf32>
    %c0_21 = arith.constant 0 : index
    %c0_22 = arith.constant 0 : index
    %27 = vector.load %arg9[%c0_21, %c0_22] : memref<1x128xf32, #tpu.memory_space<vmem>>, vector<1x128xf32>
    %28 = vector.broadcast %27 : vector<1x128xf32> to vector<128x128xf32>
    %29 = arith.addf %26, %28 : vector<128x128xf32>
    %c0_23 = arith.constant 0 : index
    %c0_24 = arith.constant 0 : index
    %30 = vector.load %arg10[%c0_23, %c0_24] : memref<128x128xf32, #tpu.memory_space<vmem>>, vector<128x128xf32>
    tpu.vector_store %arg10[%c0_23, %c0_24], %29 {strides = array<i32>} : memref<128x128xf32, #tpu.memory_space<vmem>>, vector<128x128xf32>,
    return
  }
  func.func @transform_0(%arg0: i32) -> (i32, i32) {
    %c0_i32 = arith.constant 0 : i32
    %c0_i32_0 = arith.constant 0 : i32
    return %arg0, %c0_i32 : i32, i32
  }
  func.func @transform_1(%arg0: i32) -> (i32, i32) {
    %c0_i32 = arith.constant 0 : i32
    %c0_i32_0 = arith.constant 0 : i32
    %c0_i32_1 = arith.constant 0 : i32
    return %c0_i32, %c0_i32_0 : i32, i32
  }
  func.func @transform_2(%arg0: i32) -> (i32, i32) {
    %c0_i32 = arith.constant 0 : i32
    %c0_i32_0 = arith.constant 0 : i32
    %c0_i32_1 = arith.constant 0 : i32
    return %c0_i32, %c0_i32_0 : i32, i32
  }
  func.func @transform_3(%arg0: i32) -> (i32, i32) {
    %c0_i32 = arith.constant 0 : i32
    %c0_i32_0 = arith.constant 0 : i32
    %c0_i32_1 = arith.constant 0 : i32
    return %c0_i32, %c0_i32_0 : i32, i32
  }
  func.func @transform_4(%arg0: i32) -> (i32, i32) {
    %c0_i32 = arith.constant 0 : i32
    %c0_i32_0 = arith.constant 0 : i32
    %c0_i32_1 = arith.constant 0 : i32
    return %c0_i32, %c0_i32_0 : i32, i32
  }
  func.func @transform_5(%arg0: i32) -> (i32, i32) {
    %c0_i32 = arith.constant 0 : i32
    %c0_i32_0 = arith.constant 0 : i32
    %c0_i32_1 = arith.constant 0 : i32
    return %c0_i32, %c0_i32_0 : i32, i32
  }
  func.func @transform_6(%arg0: i32) -> (i32, i32) {
    %c0_i32 = arith.constant 0 : i32
    %c0_i32_0 = arith.constant 0 : i32
    %c0_i32_1 = arith.constant 0 : i32
    return %c0_i32, %c0_i32_0 : i32, i32
  }
  func.func @transform_7(%arg0: i32) -> (i32, i32) {
    %c0_i32 = arith.constant 0 : i32
    %c0_i32_0 = arith.constant 0 : i32
    %c0_i32_1 = arith.constant 0 : i32
    return %c0_i32, %c0_i32_0 : i32, i32
  }
  func.func @transform_8(%arg0: i32) -> (i32, i32) {
    %c0_i32 = arith.constant 0 : i32
    %c0_i32_0 = arith.constant 0 : i32
    %c0_i32_1 = arith.constant 0 : i32
    return %c0_i32, %c0_i32_0 : i32, i32
  }
  func.func @transform_9(%arg0: i32) -> (i32, i32) {
    %c0_i32 = arith.constant 0 : i32
    %c0_i32_0 = arith.constant 0 : i32
    return %arg0, %c0_i32 : i32, i32
  }
}

</mosaic_0001>

<llo_original>
// kernel: improved_eight_class_forward.1
$region0: #{improved_eight_class_forward.1}
  #allocation0 [shape = 'u32[]', space=smem, size = 0x4, offset = 0x4, fixed_abs, tag = 'smem constant byte address 0x4 - core index']
  #allocation1 [shape = 'u32[144,128]{1,0:T(1,128)}', space=vmem, size = 0x12000, scoped, tag = 'internal scratch']
  %s0 = inlined_call_operand.vmem [shape: f32[256,768], index: 0, kind: input, shape index: {}]
  %s1 = inlined_call_operand.vmem [shape: f32[768,256], index: 1, kind: input, shape index: {}]
  %s2 = inlined_call_operand.vmem [shape: f32[1,256], index: 2, kind: input, shape index: {}]
  %s3 = inlined_call_operand.vmem [shape: f32[256,128], index: 3, kind: input, shape index: {}]
  %s4 = inlined_call_operand.vmem [shape: f32[1,128], index: 4, kind: input, shape index: {}]
  %s5 = inlined_call_operand.vmem [shape: f32[128,128], index: 5, kind: input, shape index: {}]
  %s6 = inlined_call_operand.vmem [shape: f32[1,128], index: 6, kind: input, shape index: {}]
  %s7 = inlined_call_operand.vmem [shape: f32[128,128], index: 7, kind: input, shape index: {}]
  %s8 = inlined_call_operand.vmem [shape: f32[1,128], index: 8, kind: input, shape index: {}]
  %s9 = inlined_call_operand.vmem [shape: f32[256,128], index: 9, kind: output, shape index: {}]
  %s10 = sld [smem:[#allocation0]]
  $region69: #{improved_eight_class_forward.1} parent=0
    _
  %s12 = ssub.s32 1, %s10
  %s13 = scalar_select 0, %s12, %s10
  loop: start=0, step=1, limit=4
  $region2: #{improved_eight_class_forward.1} parent=0 // loop_pre_header
    _
  $region3: #{improved_eight_class_forward.1} parent=0 // loop_header
    %s15 = sphi 0, %s19
    %p16 = scmp.ge.s32.totalorder %s15, 4
    %s25 = sphi 0, %s27
    %s28 = sphi 0, %s25
    %s29 = sphi 0, %s28
    %s45 = sphi 0, %s29
    %s49 = sphi 0, %s49
    %s51 = sphi 0, %s49
    %s52 = sphi 0, %s51
    %s66 = sphi 0, %s52
    %s70 = sphi 0, %s70
    %s72 = sphi 0, %s70
    %s73 = sphi 0, %s72
    %s87 = sphi 0, %s73
    %s91 = sphi 0, %s91
    %s93 = sphi 0, %s91
    %s94 = sphi 0, %s93
    %s108 = sphi 0, %s94
    %s112 = sphi 0, %s112
    %s114 = sphi 0, %s112
    %s115 = sphi 0, %s114
    %s129 = sphi 0, %s115
    %s133 = sphi 0, %s133
    %s135 = sphi 0, %s133
    %s136 = sphi 0, %s135
    %s150 = sphi 0, %s136
    %s154 = sphi 0, %s154
    %s156 = sphi 0, %s154
    %s157 = sphi 0, %s156
    %s171 = sphi 0, %s157
    %s175 = sphi 0, %s175
    %s177 = sphi 0, %s175
    %s178 = sphi 0, %s177
    %s192 = sphi 0, %s178
    %s196 = sphi 0, %s196
    %s198 = sphi 0, %s196
    %s199 = sphi 0, %s198
    %s213 = sphi 0, %s199
    %s219 = sphi 0, %s221
    %s222 = sphi 0, %s219
    %s223 = sphi 0, %s222
    %s239 = sphi 0, %s223
  $region4: #{improved_eight_class_forward.1} parent=0 // loop_header_branch
    %18 = sbr.rel (%p16) target = $region8
  $region5: #{improved_eight_class_forward.1} parent=0 // loop_body
    %s20 = ssub.s32 %s15, 1
    %s21 = ssub.s32 %s15, 2
    %s22 = sadd.s32 %s15, 1
    %s23 = ssub.s32 %s15, %s22
    %p24 = scmp.eq.s32.totalorder %s23, 0
    %s26 = sadd.s32 %s25, 1
    %s27 = scalar_select %p24, %s25, %s26
    %p30 = pneg %p24
    %p31 = scmp.eq.s32.totalorder %s15, 1
    %p32 = por %p30, %p31
    %p33 = scmp.ne.s32.totalorder %s25, %s28
    %p34 = scmp.eq.s32.totalorder %s15, 0
    %p35 = por %p33, %p34
    %p36 = scmp.ne.s32.totalorder %s25, %s28
    %p37 = scmp.eq.s32.totalorder %s20, 1
    %p38 = por %p36, %p37
    %p39 = scmp.ne.s32.totalorder %s28, %s29
    %p40 = scmp.eq.s32.totalorder %s20, 0
    %p41 = por %p39, %p40
    %p42 = scmp.ne.s32.totalorder %s28, %s29
    %p43 = scmp.eq.s32.totalorder %s21, 1
    %p44 = por %p42, %p43
    %p46 = scmp.ne.s32.totalorder %s29, %s45
    %p47 = scmp.eq.s32.totalorder %s21, 0
    %p48 = por %p46, %p47
    %s50 = sadd.s32 %s49, 1
    %p53 = scmp.eq.s32.totalorder %s15, 1
    %p54 = scmp.ne.s32.totalorder %s49, %s51
    %p55 = scmp.eq.s32.totalorder %s15, 0
    %p56 = por %p54, %p55
    %p57 = scmp.ne.s32.totalorder %s49, %s51
    %p58 = scmp.eq.s32.totalorder %s20, 1
    %p59 = por %p57, %p58
    %p60 = scmp.ne.s32.totalorder %s51, %s52
    %p61 = scmp.eq.s32.totalorder %s20, 0
    %p62 = por %p60, %p61
    %p63 = scmp.ne.s32.totalorder %s51, %s52
    %p64 = scmp.eq.s32.totalorder %s21, 1
    %p65 = por %p63, %p64
    %p67 = scmp.ne.s32.totalorder %s52, %s66
    %p68 = scmp.eq.s32.totalorder %s21, 0
    %p69 = por %p67, %p68
    %s71 = sadd.s32 %s70, 1
    %p74 = scmp.eq.s32.totalorder %s15, 1
    %p75 = scmp.ne.s32.totalorder %s70, %s72
    %p76 = scmp.eq.s32.totalorder %s15, 0
    %p77 = por %p75, %p76
    %p78 = scmp.ne.s32.totalorder %s70, %s72
    %p79 = scmp.eq.s32.totalorder %s20, 1
    %p80 = por %p78, %p79
    %p81 = scmp.ne.s32.totalorder %s72, %s73
    %p82 = scmp.eq.s32.totalorder %s20, 0
    %p83 = por %p81, %p82
    %p84 = scmp.ne.s32.totalorder %s72, %s73
    %p85 = scmp.eq.s32.totalorder %s21, 1
    %p86 = por %p84, %p85
    %p88 = scmp.ne.s32.totalorder %s73, %s87
    %p89 = scmp.eq.s32.totalorder %s21, 0
    %p90 = por %p88, %p89
    %s92 = sadd.s32 %s91, 1
    %p95 = scmp.eq.s32.totalorder %s15, 1
    %p96 = scmp.ne.s32.totalorder %s91, %s93
    %p97 = scmp.eq.s32.totalorder %s15, 0
    %p98 = por %p96, %p97
    %p99 = scmp.ne.s32.totalorder %s91, %s93
    %p100 = scmp.eq.s32.totalorder %s20, 1
    %p101 = por %p99, %p100
    %p102 = scmp.ne.s32.totalorder %s93, %s94
    %p103 = scmp.eq.s32.totalorder %s20, 0
    %p104 = por %p102, %p103
    %p105 = scmp.ne.s32.totalorder %s93, %s94
    %p106 = scmp.eq.s32.totalorder %s21, 1
    %p107 = por %p105, %p106
    %p109 = scmp.ne.s32.totalorder %s94, %s108
    %p110 = scmp.eq.s32.totalorder %s21, 0
    %p111 = por %p109, %p110
    %s113 = sadd.s32 %s112, 1
    %p116 = scmp.eq.s32.totalorder %s15, 1
    %p117 = scmp.ne.s32.totalorder %s112, %s114
    %p118 = scmp.eq.s32.totalorder %s15, 0
    %p119 = por %p117, %p118
    %p120 = scmp.ne.s32.totalorder %s112, %s114
    %p121 = scmp.eq.s32.totalorder %s20, 1
    %p122 = por %p120, %p121
    %p123 = scmp.ne.s32.totalorder %s114, %s115
    %p124 = scmp.eq.s32.totalorder %s20, 0
    %p125 = por %p123, %p124
    %p126 = scmp.ne.s32.totalorder %s114, %s115
    %p127 = scmp.eq.s32.totalorder %s21, 1
    %p128 = por %p126, %p127
    %p130 = scmp.ne.s32.totalorder %s115, %s129
    %p131 = scmp.eq.s32.totalorder %s21, 0
    %p132 = por %p130, %p131
    %s134 = sadd.s32 %s133, 1
    %p137 = scmp.eq.s32.totalorder %s15, 1
    %p138 = scmp.ne.s32.totalorder %s133, %s135
    %p139 = scmp.eq.s32.totalorder %s15, 0
    %p140 = por %p138, %p139
    %p141 = scmp.ne.s32.totalorder %s133, %s135
    %p142 = scmp.eq.s32.totalorder %s20, 1
    %p143 = por %p141, %p142
    %p144 = scmp.ne.s32.totalorder %s135, %s136
    %p145 = scmp.eq.s32.totalorder %s20, 0
    %p146 = por %p144, %p145
    %p147 = scmp.ne.s32.totalorder %s135, %s136
    %p148 = scmp.eq.s32.totalorder %s21, 1
    %p149 = por %p147, %p148
    %p151 = scmp.ne.s32.totalorder %s136, %s150
    %p152 = scmp.eq.s32.totalorder %s21, 0
    %p153 = por %p151, %p152
    %s155 = sadd.s32 %s154, 1
    %p158 = scmp.eq.s32.totalorder %s15, 1
    %p159 = scmp.ne.s32.totalorder %s154, %s156
    %p160 = scmp.eq.s32.totalorder %s15, 0
    %p161 = por %p159, %p160
    %p162 = scmp.ne.s32.totalorder %s154, %s156
    %p163 = scmp.eq.s32.totalorder %s20, 1
    %p164 = por %p162, %p163
    %p165 = scmp.ne.s32.totalorder %s156, %s157
    %p166 = scmp.eq.s32.totalorder %s20, 0
    %p167 = por %p165, %p166
    %p168 = scmp.ne.s32.totalorder %s156, %s157
    %p169 = scmp.eq.s32.totalorder %s21, 1
    %p170 = por %p168, %p169
    %p172 = scmp.ne.s32.totalorder %s157, %s171
    %p173 = scmp.eq.s32.totalorder %s21, 0
    %p174 = por %p172, %p173
    %s176 = sadd.s32 %s175, 1
    %p179 = scmp.eq.s32.totalorder %s15, 1
    %p180 = scmp.ne.s32.totalorder %s175, %s177
    %p181 = scmp.eq.s32.totalorder %s15, 0
    %p182 = por %p180, %p181
    %p183 = scmp.ne.s32.totalorder %s175, %s177
    %p184 = scmp.eq.s32.totalorder %s20, 1
    %p185 = por %p183, %p184
    %p186 = scmp.ne.s32.totalorder %s177, %s178
    %p187 = scmp.eq.s32.totalorder %s20, 0
    %p188 = por %p186, %p187
    %p189 = scmp.ne.s32.totalorder %s177, %s178
    %p190 = scmp.eq.s32.totalorder %s21, 1
    %p191 = por %p189, %p190
    %p193 = scmp.ne.s32.totalorder %s178, %s192
    %p194 = scmp.eq.s32.totalorder %s21, 0
    %p195 = por %p193, %p194
    %s197 = sadd.s32 %s196, 1
    %p200 = scmp.eq.s32.totalorder %s15, 1
    %p201 = scmp.ne.s32.totalorder %s196, %s198
    %p202 = scmp.eq.s32.totalorder %s15, 0
    %p203 = por %p201, %p202
    %p204 = scmp.ne.s32.totalorder %s196, %s198
    %p205 = scmp.eq.s32.totalorder %s20, 1
    %p206 = por %p204, %p205
    %p207 = scmp.ne.s32.totalorder %s198, %s199
    %p208 = scmp.eq.s32.totalorder %s20, 0
    %p209 = por %p207, %p208
    %p210 = scmp.ne.s32.totalorder %s198, %s199
    %p211 = scmp.eq.s32.totalorder %s21, 1
    %p212 = por %p210, %p211
    %p214 = scmp.ne.s32.totalorder %s199, %s213
    %p215 = scmp.eq.s32.totalorder %s21, 0
    %p216 = por %p214, %p215
    %s217 = ssub.s32 %s15, %s22
    %p218 = scmp.eq.s32.totalorder %s217, 0
    %s220 = sadd.s32 %s219, 1
    %s221 = scalar_select %p218, %s219, %s220
    %p224 = pneg %p218
    %p225 = scmp.eq.s32.totalorder %s15, 1
    %p226 = por %p224, %p225
    %p227 = scmp.ne.s32.totalorder %s219, %s222
    %p228 = scmp.eq.s32.totalorder %s15, 0
    %p229 = por %p227, %p228
    %p230 = scmp.ne.s32.totalorder %s219, %s222
    %p231 = scmp.eq.s32.totalorder %s20, 1
    %p232 = por %p230, %p231
    %p233 = scmp.ne.s32.totalorder %s222, %s223
    %p234 = scmp.eq.s32.totalorder %s20, 0
    %p235 = por %p233, %p234
    %p236 = scmp.ne.s32.totalorder %s222, %s223
    %p237 = scmp.eq.s32.totalorder %s21, 1
    %p238 = por %p236, %p237
    %p240 = scmp.ne.s32.totalorder %s223, %s239
    %p241 = scmp.eq.s32.totalorder %s21, 0
    %p242 = por %p240, %p241
    %p243 = scmp.le.s32.totalorder 1, %s15
    %p244 = scmp.lt.s32.totalorder %s15, 3
    %p245 = pnand %p243, %p244
    %p246 = pneg %p245
    // Predicated region
    $region9: #{improved_eight_class_forward.1} parent=5 // pred_check
      _
    $region10: #{improved_eight_class_forward.1} parent=5 // pred_check_branch
      %248 = sbr.rel (%p245) target = $region12
    $region11: #{improved_eight_class_forward.1} parent=5 // pred_region
      %s249 = ssub.s32 %s15, 1
      // Predicated region
      $region13: #{improved_eight_class_forward.1} parent=11 // pred_check
        %p250 = pneg %p62
      $region14: #{improved_eight_class_forward.1} parent=11 // pred_check_branch
        %252 = sbr.rel (%p250) target = $region16
      $region15: #{improved_eight_class_forward.1} parent=11 // pred_region
        _
      $region16: #{improved_eight_class_forward.1} parent=11 // pred_fallthru
        _
      // Predicated region
      $region17: #{improved_eight_class_forward.1} parent=11 // pred_check
        %p253 = pneg %p83
      $region18: #{improved_eight_class_forward.1} parent=11 // pred_check_branch
        %255 = sbr.rel (%p253) target = $region20
      $region19: #{improved_eight_class_forward.1} parent=11 // pred_region
        _
      $region20: #{improved_eight_class_forward.1} parent=11 // pred_fallthru
        _
      // Predicated region
      $region21: #{improved_eight_class_forward.1} parent=11 // pred_check
        %p256 = pneg %p104
      $region22: #{improved_eight_class_forward.1} parent=11 // pred_check_branch
        %258 = sbr.rel (%p256) target = $region24
      $region23: #{improved_eight_class_forward.1} parent=11 // pred_region
        _
      $region24: #{improved_eight_class_forward.1} parent=11 // pred_fallthru
        _
      // Predicated region
      $region25: #{improved_eight_class_forward.1} parent=11 // pred_check
        %p259 = pneg %p125
      $region26: #{improved_eight_class_forward.1} parent=11 // pred_check_branch
        %261 = sbr.rel (%p259) target = $region28
      $region27: #{improved_eight_class_forward.1} parent=11 // pred_region
        _
      $region28: #{improved_eight_class_forward.1} parent=11 // pred_fallthru
        _
      // Predicated region
      $region29: #{improved_eight_class_forward.1} parent=11 // pred_check
        %p262 = pneg %p146
      $region30: #{improved_eight_class_forward.1} parent=11 // pred_check_branch
        %264 = sbr.rel (%p262) target = $region32
      $region31: #{improved_eight_class_forward.1} parent=11 // pred_region
        _
      $region32: #{improved_eight_class_forward.1} parent=11 // pred_fallthru
        _
      // Predicated region
      $region33: #{improved_eight_class_forward.1} parent=11 // pred_check
        %p265 = pneg %p167
      $region34: #{improved_eight_class_forward.1} parent=11 // pred_check_branch
        %267 = sbr.rel (%p265) target = $region36
      $region35: #{improved_eight_class_forward.1} parent=11 // pred_region
        _
      $region36: #{improved_eight_class_forward.1} parent=11 // pred_fallthru
        _
      // Predicated region
      $region37: #{improved_eight_class_forward.1} parent=11 // pred_check
        %p268 = pneg %p188
      $region38: #{improved_eight_class_forward.1} parent=11 // pred_check_branch
        %270 = sbr.rel (%p268) target = $region40
      $region39: #{improved_eight_class_forward.1} parent=11 // pred_region
        _
      $region40: #{improved_eight_class_forward.1} parent=11 // pred_fallthru
        _
      // Predicated region
      $region41: #{improved_eight_class_forward.1} parent=11 // pred_check
        %p271 = pneg %p209
      $region42: #{improved_eight_class_forward.1} parent=11 // pred_check_branch
        %273 = sbr.rel (%p271) target = $region44
      $region43: #{improved_eight_class_forward.1} parent=11 // pred_region
        _
      $region44: #{improved_eight_class_forward.1} parent=11 // pred_fallthru
        _
    $region12: #{improved_eight_class_forward.1} parent=5 // pred_fallthru
      _
    %p274 = scmp.lt.s32.totalorder %s15, 2
    // Predicated region
    $region45: #{improved_eight_class_forward.1} parent=5 // pred_check
      %p275 = pneg %p274
    $region46: #{improved_eight_class_forward.1} parent=5 // pred_check_branch
      %277 = sbr.rel (%p275) target = $region48
    $region47: #{improved_eight_class_forward.1} parent=5 // pred_region
      // Predicated region
      $region49: #{improved_eight_class_forward.1} parent=47 // pred_check
        %p278 = pneg %p35
      $region50: #{improved_eight_class_forward.1} parent=47 // pred_check_branch
        %280 = sbr.rel (%p278) target = $region52
      $region51: #{improved_eight_class_forward.1} parent=47 // pred_region
        %s281 = smul.u32 16, %s15
        %p282 = scmp.lt.s32.totalorder %s281, 31
        %s283 = scalar_select %p282, %s281, 31
        %s284 = smul.addr %s283, 6
        %s285 = smul.addr %s284, 8
        %s286 = scalar_lea.vmem %s0, %s285
        %s287 = smul.u32 16, %s15
      $region52: #{improved_eight_class_forward.1} parent=47 // pred_fallthru
        _
    $region48: #{improved_eight_class_forward.1} parent=5 // pred_fallthru
      _
    %p288 = scmp.le.s32.totalorder 1, %s15
    %p289 = scmp.lt.s32.totalorder %s15, 3
    %p290 = pnand %p288, %p289
    %p291 = pneg %p290
    // Predicated region
    $region53: #{improved_eight_class_forward.1} parent=5 // pred_check
      _
    $region54: #{improved_eight_class_forward.1} parent=5 // pred_check_branch
      %293 = sbr.rel (%p290) target = $region56
    $region55: #{improved_eight_class_forward.1} parent=5 // pred_region
      %s294 = ssub.s32 %s15, 1
      %s295 = smul.u32 16, %s20
      %p296 = scmp.lt.s32.totalorder %s295, 31
      %s297 = scalar_select %p296, %s295, 31
      %s298 = smul.addr %s297, 6
      %s299 = smul.addr %s298, 8
      %s300 = scalar_lea.vmem %s0, %s299
      %p301 = pneg %p41
      %p302 = pneg %p38
      %p303 = pneg %p62
      %p304 = pneg %p59
      %p305 = pneg %p83
      %p306 = pneg %p80
      %p307 = pneg %p104
      %p308 = pneg %p101
      %p309 = pneg %p125
      %p310 = pneg %p122
      %p311 = pneg %p146
      %p312 = pneg %p143
      %p313 = pneg %p167
      %p314 = pneg %p164
      %p315 = pneg %p188
      %p316 = pneg %p185
      %p317 = pneg %p209
      %p318 = pneg %p206
      %p319 = pneg %p235
      %p320 = pneg %p232
      %s321 = smul.u32 16, %s20
      %p322 = scmp.lt.s32.totalorder %s321, 31
      %s323 = scalar_select %p322, %s321, 31
      %s324 = smul.addr %s323, 8
      %s325 = scalar_lea.vmem %s9, %s324
      %s326 = smul.u32 16, %s20
      %p327 = scmp.lt.s32.totalorder %s326, 31
      %s328 = scalar_select %p327, %s326, 31
      %s329 = smul.addr %s328, 6
      %s330 = smul.addr %s329, 8
      %s331 = scalar_lea.vmem %s0, %s330
      %s332 = smul.u32 16, %s20
      %s333 = smul.u32 16, %s20
      %p334 = scmp.lt.s32.totalorder %s333, 31
      %s335 = scalar_select %p334, %s333, 31
      %s336 = smul.addr %s335, 8
      %s337 = scalar_lea.vmem %s9, %s336
      %s338 = smul.u32 16, %s20
      %v339 = vld [vmem:[%s1] sm:$0xff]
      %v340 = vld [vmem:[%s1 + $0x8] sm:$0xff]
      %v341 = vld [vmem:[%s1 + $0x10] sm:$0xff]
      %v342 = vld [vmem:[%s1 + $0x18] sm:$0xff]
      %v343 = vld [vmem:[%s1 + $0x20] sm:$0xff]
      %v344 = vld [vmem:[%s1 + $0x28] sm:$0xff]
      %v345 = vld [vmem:[%s1 + $0x30] sm:$0xff]
      %v346 = vld [vmem:[%s1 + $0x38] sm:$0xff]
      %v347 = vld [vmem:[%s1 + $0x40] sm:$0xff]
      %v348 = vld [vmem:[%s1 + $0x48] sm:$0xff]
      %v349 = vld [vmem:[%s1 + $0x50] sm:$0xff]
      %v350 = vld [vmem:[%s1 + $0x58] sm:$0xff]
      %v351 = vld [vmem:[%s1 + $0x60] sm:$0xff]
      %v352 = vld [vmem:[%s1 + $0x68] sm:$0xff]
      %v353 = vld [vmem:[%s1 + $0x70] sm:$0xff]
      %v354 = vld [vmem:[%s1 + $0x78] sm:$0xff]
      %v355 = vld [vmem:[%s1 + $0x80] sm:$0xff]
      %v356 = vld [vmem:[%s1 + $0x88] sm:$0xff]
      %v357 = vld [vmem:[%s1 + $0x90] sm:$0xff]
      %v358 = vld [vmem:[%s1 + $0x98] sm:$0xff]
      %v359 = vld [vmem:[%s1 + $0xa0] sm:$0xff]
      %v360 = vld [vmem:[%s1 + $0xa8] sm:$0xff]
      %v361 = vld [vmem:[%s1 + $0xb0] sm:$0xff]
      %v362 = vld [vmem:[%s1 + $0xb8] sm:$0xff]
      %v363 = vld [vmem:[%s1 + $0xc0] sm:$0xff]
      %v364 = vld [vmem:[%s1 + $0xc8] sm:$0xff]
      %v365 = vld [vmem:[%s1 + $0xd0] sm:$0xff]
      %v366 = vld [vmem:[%s1 + $0xd8] sm:$0xff]
      %v367 = vld [vmem:[%s1 + $0xe0] sm:$0xff]
      %v368 = vld [vmem:[%s1 + $0xe8] sm:$0xff]
      %v369 = vld [vmem:[%s1 + $0xf0] sm:$0xff]
      %v370 = vld [vmem:[%s1 + $0xf8] sm:$0xff]
      %v371 = vld [vmem:[%s1 + $0x100] sm:$0xff]
      %v372 = vld [vmem:[%s1 + $0x108] sm:$0xff]
      %v373 = vld [vmem:[%s1 + $0x110] sm:$0xff]
      %v374 = vld [vmem:[%s1 + $0x118] sm:$0xff]
      %v375 = vld [vmem:[%s1 + $0x120] sm:$0xff]
      %v376 = vld [vmem:[%s1 + $0x128] sm:$0xff]
      %v377 = vld [vmem:[%s1 + $0x130] sm:$0xff]
      %v378 = vld [vmem:[%s1 + $0x138] sm:$0xff]
      %v379 = vld [vmem:[%s1 + $0x140] sm:$0xff]
      %v380 = vld [vmem:[%s1 + $0x148] sm:$0xff]
      %v381 = vld [vmem:[%s1 + $0x150] sm:$0xff]
      %v382 = vld [vmem:[%s1 + $0x158] sm:$0xff]
      %v383 = vld [vmem:[%s1 + $0x160] sm:$0xff]
      %v384 = vld [vmem:[%s1 + $0x168] sm:$0xff]
      %v385 = vld [vmem:[%s1 + $0x170] sm:$0xff]
      %v386 = vld [vmem:[%s1 + $0x178] sm:$0xff]
      %v387 = vld [vmem:[%s1 + $0x180] sm:$0xff]
      %v388 = vld [vmem:[%s1 + $0x188] sm:$0xff]
      %v389 = vld [vmem:[%s1 + $0x190] sm:$0xff]
      %v390 = vld [vmem:[%s1 + $0x198] sm:$0xff]
      %v391 = vld [vmem:[%s1 + $0x1a0] sm:$0xff]
      %v392 = vld [vmem:[%s1 + $0x1a8] sm:$0xff]
      %v393 = vld [vmem:[%s1 + $0x1b0] sm:$0xff]
      %v394 = vld [vmem:[%s1 + $0x1b8] sm:$0xff]
      %v395 = vld [vmem:[%s1 + $0x1c0] sm:$0xff]
      %v396 = vld [vmem:[%s1 + $0x1c8] sm:$0xff]
      %v397 = vld [vmem:[%s1 + $0x1d0] sm:$0xff]
      %v398 = vld [vmem:[%s1 + $0x1d8] sm:$0xff]
      %v399 = vld [vmem:[%s1 + $0x1e0] sm:$0xff]
      %v400 = vld [vmem:[%s1 + $0x1e8] sm:$0xff]
      %v401 = vld [vmem:[%s1 + $0x1f0] sm:$0xff]
      %v402 = vld [vmem:[%s1 + $0x1f8] sm:$0xff]
      %v403 = vld [vmem:[%s1 + $0x200] sm:$0xff]
      %v404 = vld [vmem:[%s1 + $0x208] sm:$0xff]
      %v405 = vld [vmem:[%s1 + $0x210] sm:$0xff]
      %v406 = vld [vmem:[%s1 + $0x218] sm:$0xff]
      %v407 = vld [vmem:[%s1 + $0x220] sm:$0xff]
      %v408 = vld [vmem:[%s1 + $0x228] sm:$0xff]
      %v409 = vld [vmem:[%s1 + $0x230] sm:$0xff]
      %v410 = vld [vmem:[%s1 + $0x238] sm:$0xff]
      %v411 = vld [vmem:[%s1 + $0x240] sm:$0xff]
      %v412 = vld [vmem:[%s1 + $0x248] sm:$0xff]
      %v413 = vld [vmem:[%s1 + $0x250] sm:$0xff]
      %v414 = vld [vmem:[%s1 + $0x258] sm:$0xff]
      %v415 = vld [vmem:[%s1 + $0x260] sm:$0xff]
      %v416 = vld [vmem:[%s1 + $0x268] sm:$0xff]
      %v417 = vld [vmem:[%s1 + $0x270] sm:$0xff]
      %v418 = vld [vmem:[%s1 + $0x278] sm:$0xff]
      %v419 = vld [vmem:[%s1 + $0x280] sm:$0xff]
      %v420 = vld [vmem:[%s1 + $0x288] sm:$0xff]
      %v421 = vld [vmem:[%s1 + $0x290] sm:$0xff]
      %v422 = vld [vmem:[%s1 + $0x298] sm:$0xff]
      %v423 = vld [vmem:[%s1 + $0x2a0] sm:$0xff]
      %v424 = vld [vmem:[%s1 + $0x2a8] sm:$0xff]
      %v425 = vld [vmem:[%s1 + $0x2b0] sm:$0xff]
      %v426 = vld [vmem:[%s1 + $0x2b8] sm:$0xff]
      %v427 = vld [vmem:[%s1 + $0x2c0] sm:$0xff]
      %v428 = vld [vmem:[%s1 + $0x2c8] sm:$0xff]
      %v429 = vld [vmem:[%s1 + $0x2d0] sm:$0xff]
      %v430 = vld [vmem:[%s1 + $0x2d8] sm:$0xff]
      %v431 = vld [vmem:[%s1 + $0x2e0] sm:$0xff]
      %v432 = vld [vmem:[%s1 + $0x2e8] sm:$0xff]
      %v433 = vld [vmem:[%s1 + $0x2f0] sm:$0xff]
      %v434 = vld [vmem:[%s1 + $0x2f8] sm:$0xff]
      %v435 = vld [vmem:[%s1 + $0x300] sm:$0xff]
      %v436 = vld [vmem:[%s1 + $0x308] sm:$0xff]
      %v437 = vld [vmem:[%s1 + $0x310] sm:$0xff]
      %v438 = vld [vmem:[%s1 + $0x318] sm:$0xff]
      %v439 = vld [vmem:[%s1 + $0x320] sm:$0xff]
      %v440 = vld [vmem:[%s1 + $0x328] sm:$0xff]
      %v441 = vld [vmem:[%s1 + $0x330] sm:$0xff]
      %v442 = vld [vmem:[%s1 + $0x338] sm:$0xff]
      %v443 = vld [vmem:[%s1 + $0x340] sm:$0xff]
      %v444 = vld [vmem:[%s1 + $0x348] sm:$0xff]
      %v445 = vld [vmem:[%s1 + $0x350] sm:$0xff]
      %v446 = vld [vmem:[%s1 + $0x358] sm:$0xff]
      %v447 = vld [vmem:[%s1 + $0x360] sm:$0xff]
      %v448 = vld [vmem:[%s1 + $0x368] sm:$0xff]
      %v449 = vld [vmem:[%s1 + $0x370] sm:$0xff]
      %v450 = vld [vmem:[%s1 + $0x378] sm:$0xff]
      %v451 = vld [vmem:[%s1 + $0x380] sm:$0xff]
      %v452 = vld [vmem:[%s1 + $0x388] sm:$0xff]
      %v453 = vld [vmem:[%s1 + $0x390] sm:$0xff]
      %v454 = vld [vmem:[%s1 + $0x398] sm:$0xff]
      %v455 = vld [vmem:[%s1 + $0x3a0] sm:$0xff]
      %v456 = vld [vmem:[%s1 + $0x3a8] sm:$0xff]
      %v457 = vld [vmem:[%s1 + $0x3b0] sm:$0xff]
      %v458 = vld [vmem:[%s1 + $0x3b8] sm:$0xff]
      %v459 = vld [vmem:[%s1 + $0x3c0] sm:$0xff]
      %v460 = vld [vmem:[%s1 + $0x3c8] sm:$0xff]
      %v461 = vld [vmem:[%s1 + $0x3d0] sm:$0xff]
      %v462 = vld [vmem:[%s1 + $0x3d8] sm:$0xff]
      %v463 = vld [vmem:[%s1 + $0x3e0] sm:$0xff]
      %v464 = vld [vmem:[%s1 + $0x3e8] sm:$0xff]
      %v465 = vld [vmem:[%s1 + $0x3f0] sm:$0xff]
      %v466 = vld [vmem:[%s1 + $0x3f8] sm:$0xff]
      %v467 = vld [vmem:[%s1 + $0x400] sm:$0xff]
      %v468 = vld [vmem:[%s1 + $0x408] sm:$0xff]
      %v469 = vld [vmem:[%s1 + $0x410] sm:$0xff]
      %v470 = vld [vmem:[%s1 + $0x418] sm:$0xff]
      %v471 = vld [vmem:[%s1 + $0x420] sm:$0xff]
      %v472 = vld [vmem:[%s1 + $0x428] sm:$0xff]
      %v473 = vld [vmem:[%s1 + $0x430] sm:$0xff]
      %v474 = vld [vmem:[%s1 + $0x438] sm:$0xff]
      %v475 = vld [vmem:[%s1 + $0x440] sm:$0xff]
      %v476 = vld [vmem:[%s1 + $0x448] sm:$0xff]
      %v477 = vld [vmem:[%s1 + $0x450] sm:$0xff]
      %v478 = vld [vmem:[%s1 + $0x458] sm:$0xff]
      %v479 = vld [vmem:[%s1 + $0x460] sm:$0xff]
      %v480 = vld [vmem:[%s1 + $0x468] sm:$0xff]
      %v481 = vld [vmem:[%s1 + $0x470] sm:$0xff]
      %v482 = vld [vmem:[%s1 + $0x478] sm:$0xff]
      %v483 = vld [vmem:[%s1 + $0x480] sm:$0xff]
      %v484 = vld [vmem:[%s1 + $0x488] sm:$0xff]
      %v485 = vld [vmem:[%s1 + $0x490] sm:$0xff]
      %v486 = vld [vmem:[%s1 + $0x498] sm:$0xff]
      %v487 = vld [vmem:[%s1 + $0x4a0] sm:$0xff]
      %v488 = vld [vmem:[%s1 + $0x4a8] sm:$0xff]
      %v489 = vld [vmem:[%s1 + $0x4b0] sm:$0xff]
      %v490 = vld [vmem:[%s1 + $0x4b8] sm:$0xff]
      %v491 = vld [vmem:[%s1 + $0x4c0] sm:$0xff]
      %v492 = vld [vmem:[%s1 + $0x4c8] sm:$0xff]
      %v493 = vld [vmem:[%s1 + $0x4d0] sm:$0xff]
      %v494 = vld [vmem:[%s1 + $0x4d8] sm:$0xff]
      %v495 = vld [vmem:[%s1 + $0x4e0] sm:$0xff]
      %v496 = vld [vmem:[%s1 + $0x4e8] sm:$0xff]
      %v497 = vld [vmem:[%s1 + $0x4f0] sm:$0xff]
      %v498 = vld [vmem:[%s1 + $0x4f8] sm:$0xff]
      %v499 = vld [vmem:[%s1 + $0x500] sm:$0xff]
      %v500 = vld [vmem:[%s1 + $0x508] sm:$0xff]
      %v501 = vld [vmem:[%s1 + $0x510] sm:$0xff]
      %v502 = vld [vmem:[%s1 + $0x518] sm:$0xff]
      %v503 = vld [vmem:[%s1 + $0x520] sm:$0xff]
      %v504 = vld [vmem:[%s1 + $0x528] sm:$0xff]
      %v505 = vld [vmem:[%s1 + $0x530] sm:$0xff]
      %v506 = vld [vmem:[%s1 + $0x538] sm:$0xff]
      %v507 = vld [vmem:[%s1 + $0x540] sm:$0xff]
      %v508 = vld [vmem:[%s1 + $0x548] sm:$0xff]
      %v509 = vld [vmem:[%s1 + $0x550] sm:$0xff]
      %v510 = vld [vmem:[%s1 + $0x558] sm:$0xff]
      %v511 = vld [vmem:[%s1 + $0x560] sm:$0xff]
      %v512 = vld [vmem:[%s1 + $0x568] sm:$0xff]
      %v513 = vld [vmem:[%s1 + $0x570] sm:$0xff]
      %v514 = vld [vmem:[%s1 + $0x578] sm:$0xff]
      %v515 = vld [vmem:[%s1 + $0x580] sm:$0xff]
      %v516 = vld [vmem:[%s1 + $0x588] sm:$0xff]
      %v517 = vld [vmem:[%s1 + $0x590] sm:$0xff]
      %v518 = vld [vmem:[%s1 + $0x598] sm:$0xff]
      %v519 = vld [vmem:[%s1 + $0x5a0] sm:$0xff]
      %v520 = vld [vmem:[%s1 + $0x5a8] sm:$0xff]
      %v521 = vld [vmem:[%s1 + $0x5b0] sm:$0xff]
      %v522 = vld [vmem:[%s1 + $0x5b8] sm:$0xff]
      %v523 = vld [vmem:[%s1 + $0x5c0] sm:$0xff]
      %v524 = vld [vmem:[%s1 + $0x5c8] sm:$0xff]
      %v525 = vld [vmem:[%s1 + $0x5d0] sm:$0xff]
      %v526 = vld [vmem:[%s1 + $0x5d8] sm:$0xff]
      %v527 = vld [vmem:[%s1 + $0x5e0] sm:$0xff]
      %v528 = vld [vmem:[%s1 + $0x5e8] sm:$0xff]
      %v529 = vld [vmem:[%s1 + $0x5f0] sm:$0xff]
      %v530 = vld [vmem:[%s1 + $0x5f8] sm:$0xff]
      %v531 = vld [vmem:[%s331] sm:$0xff]
      %v532 = vld [vmem:[%s331 + $0x8] sm:$0xff]
      %v533 = vld [vmem:[%s331 + $0x10] sm:$0xff]
      %v534 = vld [vmem:[%s331 + $0x18] sm:$0xff]
      %v535 = vld [vmem:[%s331 + $0x20] sm:$0xff]
      %v536 = vld [vmem:[%s331 + $0x28] sm:$0xff]
      %v537 = vld [vmem:[%s331 + $0x30] sm:$0xff]
      %v538 = vld [vmem:[%s331 + $0x38] sm:$0xff]
      %v539 = vld [vmem:[%s331 + $0x40] sm:$0xff]
      %v540 = vld [vmem:[%s331 + $0x48] sm:$0xff]
      %v541 = vld [vmem:[%s331 + $0x50] sm:$0xff]
      %v542 = vld [vmem:[%s331 + $0x58] sm:$0xff]
      %v543 = vld [vmem:[%s331 + $0x60] sm:$0xff]
      %v544 = vld [vmem:[%s331 + $0x68] sm:$0xff]
      %v545 = vld [vmem:[%s331 + $0x70] sm:$0xff]
      %v546 = vld [vmem:[%s331 + $0x78] sm:$0xff]
      %v547 = vld [vmem:[%s331 + $0x80] sm:$0xff]
      %v548 = vld [vmem:[%s331 + $0x88] sm:$0xff]
      %v549 = vld [vmem:[%s331 + $0x90] sm:$0xff]
      %v550 = vld [vmem:[%s331 + $0x98] sm:$0xff]
      %v551 = vld [vmem:[%s331 + $0xa0] sm:$0xff]
      %v552 = vld [vmem:[%s331 + $0xa8] sm:$0xff]
      %v553 = vld [vmem:[%s331 + $0xb0] sm:$0xff]
      %v554 = vld [vmem:[%s331 + $0xb8] sm:$0xff]
      %v555 = vld [vmem:[%s331 + $0xc0] sm:$0xff]
      %v556 = vld [vmem:[%s331 + $0xc8] sm:$0xff]
      %v557 = vld [vmem:[%s331 + $0xd0] sm:$0xff]
      %v558 = vld [vmem:[%s331 + $0xd8] sm:$0xff]
      %v559 = vld [vmem:[%s331 + $0xe0] sm:$0xff]
      %v560 = vld [vmem:[%s331 + $0xe8] sm:$0xff]
      %v561 = vld [vmem:[%s331 + $0xf0] sm:$0xff]
      %v562 = vld [vmem:[%s331 + $0xf8] sm:$0xff]
      %v563 = vld [vmem:[%s331 + $0x100] sm:$0xff]
      %v564 = vld [vmem:[%s331 + $0x108] sm:$0xff]
      %v565 = vld [vmem:[%s331 + $0x110] sm:$0xff]
      %v566 = vld [vmem:[%s331 + $0x118] sm:$0xff]
      %v567 = vld [vmem:[%s331 + $0x120] sm:$0xff]
      %v568 = vld [vmem:[%s331 + $0x128] sm:$0xff]
      %v569 = vld [vmem:[%s331 + $0x130] sm:$0xff]
      %v570 = vld [vmem:[%s331 + $0x138] sm:$0xff]
      %v571 = vld [vmem:[%s331 + $0x140] sm:$0xff]
      %v572 = vld [vmem:[%s331 + $0x148] sm:$0xff]
      %v573 = vld [vmem:[%s331 + $0x150] sm:$0xff]
      %v574 = vld [vmem:[%s331 + $0x158] sm:$0xff]
      %v575 = vld [vmem:[%s331 + $0x160] sm:$0xff]
      %v576 = vld [vmem:[%s331 + $0x168] sm:$0xff]
      %v577 = vld [vmem:[%s331 + $0x170] sm:$0xff]
      %v578 = vld [vmem:[%s331 + $0x178] sm:$0xff]
      %v579 = vld [vmem:[%s331 + $0x180] sm:$0xff]
      %v580 = vld [vmem:[%s331 + $0x188] sm:$0xff]
      %v581 = vld [vmem:[%s331 + $0x190] sm:$0xff]
      %v582 = vld [vmem:[%s331 + $0x198] sm:$0xff]
      %v583 = vld [vmem:[%s331 + $0x1a0] sm:$0xff]
      %v584 = vld [vmem:[%s331 + $0x1a8] sm:$0xff]
      %v585 = vld [vmem:[%s331 + $0x1b0] sm:$0xff]
      %v586 = vld [vmem:[%s331 + $0x1b8] sm:$0xff]
      %v587 = vld [vmem:[%s331 + $0x1c0] sm:$0xff]
      %v588 = vld [vmem:[%s331 + $0x1c8] sm:$0xff]
      %v589 = vld [vmem:[%s331 + $0x1d0] sm:$0xff]
      %v590 = vld [vmem:[%s331 + $0x1d8] sm:$0xff]
      %v591 = vld [vmem:[%s331 + $0x1e0] sm:$0xff]
      %v592 = vld [vmem:[%s331 + $0x1e8] sm:$0xff]
      %v593 = vld [vmem:[%s331 + $0x1f0] sm:$0xff]
      %v594 = vld [vmem:[%s331 + $0x1f8] sm:$0xff]
      %v595 = vld [vmem:[%s331 + $0x200] sm:$0xff]
      %v596 = vld [vmem:[%s331 + $0x208] sm:$0xff]
      %v597 = vld [vmem:[%s331 + $0x210] sm:$0xff]
      %v598 = vld [vmem:[%s331 + $0x218] sm:$0xff]
      %v599 = vld [vmem:[%s331 + $0x220] sm:$0xff]
      %v600 = vld [vmem:[%s331 + $0x228] sm:$0xff]
      %v601 = vld [vmem:[%s331 + $0x230] sm:$0xff]
      %v602 = vld [vmem:[%s331 + $0x238] sm:$0xff]
      %v603 = vld [vmem:[%s331 + $0x240] sm:$0xff]
      %v604 = vld [vmem:[%s331 + $0x248] sm:$0xff]
      %v605 = vld [vmem:[%s331 + $0x250] sm:$0xff]
      %v606 = vld [vmem:[%s331 + $0x258] sm:$0xff]
      %v607 = vld [vmem:[%s331 + $0x260] sm:$0xff]
      %v608 = vld [vmem:[%s331 + $0x268] sm:$0xff]
      %v609 = vld [vmem:[%s331 + $0x270] sm:$0xff]
      %v610 = vld [vmem:[%s331 + $0x278] sm:$0xff]
      %v611 = vld [vmem:[%s331 + $0x280] sm:$0xff]
      %v612 = vld [vmem:[%s331 + $0x288] sm:$0xff]
      %v613 = vld [vmem:[%s331 + $0x290] sm:$0xff]
      %v614 = vld [vmem:[%s331 + $0x298] sm:$0xff]
      %v615 = vld [vmem:[%s331 + $0x2a0] sm:$0xff]
      %v616 = vld [vmem:[%s331 + $0x2a8] sm:$0xff]
      %v617 = vld [vmem:[%s331 + $0x2b0] sm:$0xff]
      %v618 = vld [vmem:[%s331 + $0x2b8] sm:$0xff]
      %v619 = vld [vmem:[%s331 + $0x2c0] sm:$0xff]
      %v620 = vld [vmem:[%s331 + $0x2c8] sm:$0xff]
      %v621 = vld [vmem:[%s331 + $0x2d0] sm:$0xff]
      %v622 = vld [vmem:[%s331 + $0x2d8] sm:$0xff]
      %v623 = vld [vmem:[%s331 + $0x2e0] sm:$0xff]
      %v624 = vld [vmem:[%s331 + $0x2e8] sm:$0xff]
      %v625 = vld [vmem:[%s331 + $0x2f0] sm:$0xff]
      %v626 = vld [vmem:[%s331 + $0x2f8] sm:$0xff]
      %v627 = vld [vmem:[%s2] sm:$0x3]
      %v629 = vlaneseq
      %v630 = vshrl.u32 %v629, 7
      %v631 = vsub.s32 0, %v630
      %v632 = vrot.slane %v627, %v631
      %v633 = vlaneseq
      %v634 = vshrl.u32 %v633, 7
      %v635 = vsub.s32 1, %v634
      %v636 = vrot.slane %v627, %v635
      %639 = vmatprep.subr.mxu0 %v340
      %640 = vmatpush1.msra.mxu0 %v339
      %641 = vmatprep.subr.mxu0 %v342
      %642 = vmatpush1.msra.mxu0 %v341
      %643 = vmatprep.subr.mxu0 %v344
      %644 = vmatpush1.msra.mxu0 %v343
      %645 = vmatprep.subr.mxu0 %v346
      %646 = vmatpush1.msra.mxu0 %v345
      %647 = vmatprep.subr.mxu0 %v348
      %648 = vmatpush1.msra.mxu0 %v347
      %649 = vmatprep.subr.mxu0 %v350
      %650 = vmatpush1.msra.mxu0 %v349
      %651 = vmatprep.subr.mxu0 %v352
      %652 = vmatpush1.msra.mxu0 %v351
      %653 = vmatprep.subr.mxu0 %v354
      %654 = vmatpush1.msra.mxu0 %v353
      %655 = vmatprep.subr.mxu0 %v356
      %656 = vmatpush1.msra.mxu0 %v355
      %657 = vmatprep.subr.mxu0 %v358
      %658 = vmatpush1.msra.mxu0 %v357
      %659 = vmatprep.subr.mxu0 %v360
      %660 = vmatpush1.msra.mxu0 %v359
      %661 = vmatprep.subr.mxu0 %v362
      %662 = vmatpush1.msra.mxu0 %v361
      %663 = vmatprep.subr.mxu0 %v364
      %664 = vmatpush1.msra.mxu0 %v363
      %665 = vmatprep.subr.mxu0 %v366
      %666 = vmatpush1.msra.mxu0 %v365
      %667 = vmatprep.subr.mxu0 %v368
      %668 = vmatpush1.msra.mxu0 %v367
      %669 = vmatprep.subr.mxu0 %v370
      %670 = vmatpush1.msra.mxu0 %v369
      %671 = vmatprep.subr.mxu0 %v372
      %672 = vmatpush1.msra.mxu0 %v371
      %673 = vmatprep.subr.mxu0 %v374
      %674 = vmatpush1.msra.mxu0 %v373
      %675 = vmatprep.subr.mxu0 %v376
      %676 = vmatpush1.msra.mxu0 %v375
      %677 = vmatprep.subr.mxu0 %v378
      %678 = vmatpush1.msra.mxu0 %v377
      %679 = vmatprep.subr.mxu0 %v380
      %680 = vmatpush1.msra.mxu0 %v379
      %681 = vmatprep.subr.mxu0 %v382
      %682 = vmatpush1.msra.mxu0 %v381
      %683 = vmatprep.subr.mxu0 %v384
      %684 = vmatpush1.msra.mxu0 %v383
      %685 = vmatprep.subr.mxu0 %v386
      %686 = vmatpush1.msra.mxu0 %v385
      %687 = vmatprep.subr.mxu0 %v388
      %688 = vmatpush1.msra.mxu0 %v387
      %689 = vmatprep.subr.mxu0 %v390
      %690 = vmatpush1.msra.mxu0 %v389
      %691 = vmatprep.subr.mxu0 %v392
      %692 = vmatpush1.msra.mxu0 %v391
      %693 = vmatprep.subr.mxu0 %v394
      %694 = vmatpush1.msra.mxu0 %v393
      %695 = vmatprep.subr.mxu0 %v396
      %696 = vmatpush1.msra.mxu0 %v395
      %697 = vmatprep.subr.mxu0 %v398
      %698 = vmatpush1.msra.mxu0 %v397
      %699 = vmatprep.subr.mxu0 %v400
      %700 = vmatpush1.msra.mxu0 %v399
      %701 = vmatprep.subr.mxu0 %v402
      %702 = vmatpush1.msra.mxu0 %v401
      %703 = vmatprep.mubr.f32.mxu0 %v532
      %704 = vmatmul.mubr.f32.gmra.mrb[0].mxu0 %v531
      %v705 = vpop.f32.mrb[0].mxu0
      %v706 = vadd.f32 %v632, %v705
      %v707 = vpop.f32.mrb[0].mxu0
      %v708 = vadd.f32 %v636, %v707
      %709 = vmatprep.mubr.f32.mxu0 %v538
      %710 = vmatmul.mubr.f32.gmra.mrb[0].mxu0 %v537
      %v711 = vpop.f32.mrb[0].mxu0
      %v712 = vadd.f32 %v632, %v711
      %v713 = vpop.f32.mrb[0].mxu0
      %v714 = vadd.f32 %v636, %v713
      %715 = vmatprep.mubr.f32.mxu0 %v544
      %716 = vmatmul.mubr.f32.gmra.mrb[0].mxu0 %v543
      %v717 = vpop.f32.mrb[0].mxu0
      %v718 = vadd.f32 %v632, %v717
      %v719 = vpop.f32.mrb[0].mxu0
      %v720 = vadd.f32 %v636, %v719
      %721 = vmatprep.mubr.f32.mxu0 %v550
      %722 = vmatmul.mubr.f32.gmra.mrb[0].mxu0 %v549
      %v723 = vpop.f32.mrb[0].mxu0
      %v724 = vadd.f32 %v632, %v723
      %v725 = vpop.f32.mrb[0].mxu0
      %v726 = vadd.f32 %v636, %v725
      %727 = vmatprep.mubr.f32.mxu0 %v556
      %728 = vmatmul.mubr.f32.gmra.mrb[0].mxu0 %v555
      %v729 = vpop.f32.mrb[0].mxu0
      %v730 = vadd.f32 %v632, %v729
      %v731 = vpop.f32.mrb[0].mxu0
      %v732 = vadd.f32 %v636, %v731
      %733 = vmatprep.mubr.f32.mxu0 %v562
      %734 = vmatmul.mubr.f32.gmra.mrb[0].mxu0 %v561
      %v735 = vpop.f32.mrb[0].mxu0
      %v736 = vadd.f32 %v632, %v735
      %v737 = vpop.f32.mrb[0].mxu0
      %v738 = vadd.f32 %v636, %v737
      %739 = vmatprep.mubr.f32.mxu0 %v568
      %740 = vmatmul.mubr.f32.gmra.mrb[0].mxu0 %v567
      %v741 = vpop.f32.mrb[0].mxu0
      %v742 = vadd.f32 %v632, %v741
      %v743 = vpop.f32.mrb[0].mxu0
      %v744 = vadd.f32 %v636, %v743
      %745 = vmatprep.mubr.f32.mxu0 %v574
      %746 = vmatmul.mubr.f32.gmra.mrb[0].mxu0 %v573
      %v747 = vpop.f32.mrb[0].mxu0
      %v748 = vadd.f32 %v632, %v747
      %v749 = vpop.f32.mrb[0].mxu0
      %v750 = vadd.f32 %v636, %v749
      %751 = vmatprep.mubr.f32.mxu0 %v580
      %752 = vmatmul.mubr.f32.gmra.mrb[0].mxu0 %v579
      %v753 = vpop.f32.mrb[0].mxu0
      %v754 = vadd.f32 %v632, %v753
      %v755 = vpop.f32.mrb[0].mxu0
      %v756 = vadd.f32 %v636, %v755
      %757 = vmatprep.mubr.f32.mxu0 %v586
      %758 = vmatmul.mubr.f32.gmra.mrb[0].mxu0 %v585
      %v759 = vpop.f32.mrb[0].mxu0
      %v760 = vadd.f32 %v632, %v759
      %v761 = vpop.f32.mrb[0].mxu0
      %v762 = vadd.f32 %v636, %v761
      %763 = vmatprep.mubr.f32.mxu0 %v592
      %764 = vmatmul.mubr.f32.gmra.mrb[0].mxu0 %v591
      %v765 = vpop.f32.mrb[0].mxu0
      %v766 = vadd.f32 %v632, %v765
      %v767 = vpop.f32.mrb[0].mxu0
      %v768 = vadd.f32 %v636, %v767
      %769 = vmatprep.mubr.f32.mxu0 %v598
      %770 = vmatmul.mubr.f32.gmra.mrb[0].mxu0 %v597
      %v771 = vpop.f32.mrb[0].mxu0
      %v772 = vadd.f32 %v632, %v771
      %v773 = vpop.f32.mrb[0].mxu0
      %v774 = vadd.f32 %v636, %v773
      %775 = vmatprep.mubr.f32.mxu0 %v604
      %776 = vmatmul.mubr.f32.gmra.mrb[0].mxu0 %v603
      %v777 = vpop.f32.mrb[0].mxu0
      %v778 = vadd.f32 %v632, %v777
      %v779 = vpop.f32.mrb[0].mxu0
      %v780 = vadd.f32 %v636, %v779
      %781 = vmatprep.mubr.f32.mxu0 %v610
      %782 = vmatmul.mubr.f32.gmra.mrb[0].mxu0 %v609
      %v783 = vpop.f32.mrb[0].mxu0
      %v784 = vadd.f32 %v632, %v783
      %v785 = vpop.f32.mrb[0].mxu0
      %v786 = vadd.f32 %v636, %v785
      %787 = vmatprep.mubr.f32.mxu0 %v616
      %788 = vmatmul.mubr.f32.gmra.mrb[0].mxu0 %v615
      %v789 = vpop.f32.mrb[0].mxu0
      %v790 = vadd.f32 %v632, %v789
      %v791 = vpop.f32.mrb[0].mxu0
      %v792 = vadd.f32 %v636, %v791
      %793 = vmatprep.mubr.f32.mxu0 %v622
      %794 = vmatmul.mubr.f32.gmra.mrb[0].mxu0 %v621
      %v795 = vpop.f32.mrb[0].mxu0
      %v796 = vadd.f32 %v632, %v795
      %v797 = vpop.f32.mrb[0].mxu0
      %v798 = vadd.f32 %v636, %v797
      %799 = vdwg.mxu0
      %800 = vmatprep.subr.mxu0 %v404
      %801 = vmatpush1.msra.mxu0 %v403
      %802 = vmatprep.subr.mxu0 %v406
      %803 = vmatpush1.msra.mxu0 %v405
      %804 = vmatprep.subr.mxu0 %v408
      %805 = vmatpush1.msra.mxu0 %v407
      %806 = vmatprep.subr.mxu0 %v410
      %807 = vmatpush1.msra.mxu0 %v409
      %808 = vmatprep.subr.mxu0 %v412
      %809 = vmatpush1.msra.mxu0 %v411
      %810 = vmatprep.subr.mxu0 %v414
      %811 = vmatpush1.msra.mxu0 %v413
      %812 = vmatprep.subr.mxu0 %v416
      %813 = vmatpush1.msra.mxu0 %v415
      %814 = vmatprep.subr.mxu0 %v418
      %815 = vmatpush1.msra.mxu0 %v417
      %816 = vmatprep.subr.mxu0 %v420
      %817 = vmatpush1.msra.mxu0 %v419
      %818 = vmatprep.subr.mxu0 %v422
      %819 = vmatpush1.msra.mxu0 %v421
      %820 = vmatprep.subr.mxu0 %v424
      %821 = vmatpush1.msra.mxu0 %v423
      %822 = vmatprep.subr.mxu0 %v426
      %823 = vmatpush1.msra.mxu0 %v425
      %824 = vmatprep.subr.mxu0 %v428
      %825 = vmatpush1.msra.mxu0 %v427
      %826 = vmatprep.subr.mxu0 %v430
      %827 = vmatpush1.msra.mxu0 %v429
      %828 = vmatprep.subr.mxu0 %v432
      %829 = vmatpush1.msra.mxu0 %v431
      %830 = vmatprep.subr.mxu0 %v434
      %831 = vmatpush1.msra.mxu0 %v433
      %832 = vmatprep.subr.mxu0 %v436
      %833 = vmatpush1.msra.mxu0 %v435
      %834 = vmatprep.subr.mxu0 %v438
      %835 = vmatpush1.msra.mxu0 %v437
      %836 = vmatprep.subr.mxu0 %v440
      %837 = vmatpush1.msra.mxu0 %v439
      %838 = vmatprep.subr.mxu0 %v442
      %839 = vmatpush1.msra.mxu0 %v441
      %840 = vmatprep.subr.mxu0 %v444
      %841 = vmatpush1.msra.mxu0 %v443
      %842 = vmatprep.subr.mxu0 %v446
      %843 = vmatpush1.msra.mxu0 %v445
      %844 = vmatprep.subr.mxu0 %v448
      %845 = vmatpush1.msra.mxu0 %v447
      %846 = vmatprep.subr.mxu0 %v450
      %847 = vmatpush1.msra.mxu0 %v449
      %848 = vmatprep.subr.mxu0 %v452
      %849 = vmatpush1.msra.mxu0 %v451
      %850 = vmatprep.subr.mxu0 %v454
      %851 = vmatpush1.msra.mxu0 %v453
      %852 = vmatprep.subr.mxu0 %v456
      %853 = vmatpush1.msra.mxu0 %v455
      %854 = vmatprep.subr.mxu0 %v458
      %855 = vmatpush1.msra.mxu0 %v457
      %856 = vmatprep.subr.mxu0 %v460
      %857 = vmatpush1.msra.mxu0 %v459
      %858 = vmatprep.subr.mxu0 %v462
      %859 = vmatpush1.msra.mxu0 %v461
      %860 = vmatprep.subr.mxu0 %v464
      %861 = vmatpush1.msra.mxu0 %v463
      %862 = vmatprep.subr.mxu0 %v466
      %863 = vmatpush1.msra.mxu0 %v465
      %864 = vmatprep.mubr.f32.mxu0 %v534
      %865 = vmatmul.mubr.f32.gmra.mrb[0].mxu0 %v533
      %v866 = vpop.f32.mrb[0].mxu0
      %v867 = vadd.f32 %v706, %v866
      %v868 = vpop.f32.mrb[0].mxu0
      %v869 = vadd.f32 %v708, %v868
      %870 = vmatprep.mubr.f32.mxu0 %v540
      %871 = vmatmul.mubr.f32.gmra.mrb[0].mxu0 %v539
      %v872 = vpop.f32.mrb[0].mxu0
      %v873 = vadd.f32 %v712, %v872
      %v874 = vpop.f32.mrb[0].mxu0
      %v875 = vadd.f32 %v714, %v874
      %876 = vmatprep.mubr.f32.mxu0 %v546
      %877 = vmatmul.mubr.f32.gmra.mrb[0].mxu0 %v545
      %v878 = vpop.f32.mrb[0].mxu0
      %v879 = vadd.f32 %v718, %v878
      %v880 = vpop.f32.mrb[0].mxu0
      %v881 = vadd.f32 %v720, %v880
      %882 = vmatprep.mubr.f32.mxu0 %v552
      %883 = vmatmul.mubr.f32.gmra.mrb[0].mxu0 %v551
      %v884 = vpop.f32.mrb[0].mxu0
      %v885 = vadd.f32 %v724, %v884
      %v886 = vpop.f32.mrb[0].mxu0
      %v887 = vadd.f32 %v726, %v886
      %888 = vmatprep.mubr.f32.mxu0 %v558
      %889 = vmatmul.mubr.f32.gmra.mrb[0].mxu0 %v557
      %v890 = vpop.f32.mrb[0].mxu0
      %v891 = vadd.f32 %v730, %v890
      %v892 = vpop.f32.mrb[0].mxu0
      %v893 = vadd.f32 %v732, %v892
      %894 = vmatprep.mubr.f32.mxu0 %v564
      %895 = vmatmul.mubr.f32.gmra.mrb[0].mxu0 %v563
      %v896 = vpop.f32.mrb[0].mxu0
      %v897 = vadd.f32 %v736, %v896
      %v898 = vpop.f32.mrb[0].mxu0
      %v899 = vadd.f32 %v738, %v898
      %900 = vmatprep.mubr.f32.mxu0 %v570
      %901 = vmatmul.mubr.f32.gmra.mrb[0].mxu0 %v569
      %v902 = vpop.f32.mrb[0].mxu0
      %v903 = vadd.f32 %v742, %v902
      %v904 = vpop.f32.mrb[0].mxu0
      %v905 = vadd.f32 %v744, %v904
      %906 = vmatprep.mubr.f32.mxu0 %v576
      %907 = vmatmul.mubr.f32.gmra.mrb[0].mxu0 %v575
      %v908 = vpop.f32.mrb[0].mxu0
      %v909 = vadd.f32 %v748, %v908
      %v910 = vpop.f32.mrb[0].mxu0
      %v911 = vadd.f32 %v750, %v910
      %912 = vmatprep.mubr.f32.mxu0 %v582
      %913 = vmatmul.mubr.f32.gmra.mrb[0].mxu0 %v581
      %v914 = vpop.f32.mrb[0].mxu0
      %v915 = vadd.f32 %v754, %v914
      %v916 = vpop.f32.mrb[0].mxu0
      %v917 = vadd.f32 %v756, %v916
      %918 = vmatprep.mubr.f32.mxu0 %v588
      %919 = vmatmul.mubr.f32.gmra.mrb[0].mxu0 %v587
      %v920 = vpop.f32.mrb[0].mxu0
      %v921 = vadd.f32 %v760, %v920
      %v922 = vpop.f32.mrb[0].mxu0
      %v923 = vadd.f32 %v762, %v922
      %924 = vmatprep.mubr.f32.mxu0 %v594
      %925 = vmatmul.mubr.f32.gmra.mrb[0].mxu0 %v593
      %v926 = vpop.f32.mrb[0].mxu0
      %v927 = vadd.f32 %v766, %v926
      %v928 = vpop.f32.mrb[0].mxu0
      %v929 = vadd.f32 %v768, %v928
      %930 = vmatprep.mubr.f32.mxu0 %v600
      %931 = vmatmul.mubr.f32.gmra.mrb[0].mxu0 %v599
      %v932 = vpop.f32.mrb[0].mxu0
      %v933 = vadd.f32 %v772, %v932
      %v934 = vpop.f32.mrb[0].mxu0
      %v935 = vadd.f32 %v774, %v934
      %936 = vmatprep.mubr.f32.mxu0 %v606
      %937 = vmatmul.mubr.f32.gmra.mrb[0].mxu0 %v605
      %v938 = vpop.f32.mrb[0].mxu0
      %v939 = vadd.f32 %v778, %v938
      %v940 = vpop.f32.mrb[0].mxu0
      %v941 = vadd.f32 %v780, %v940
      %942 = vmatprep.mubr.f32.mxu0 %v612
      %943 = vmatmul.mubr.f32.gmra.mrb[0].mxu0 %v611
      %v944 = vpop.f32.mrb[0].mxu0
      %v945 = vadd.f32 %v784, %v944
      %v946 = vpop.f32.mrb[0].mxu0
      %v947 = vadd.f32 %v786, %v946
      %948 = vmatprep.mubr.f32.mxu0 %v618
      %949 = vmatmul.mubr.f32.gmra.mrb[0].mxu0 %v617
      %v950 = vpop.f32.mrb[0].mxu0
      %v951 = vadd.f32 %v790, %v950
      %v952 = vpop.f32.mrb[0].mxu0
      %v953 = vadd.f32 %v792, %v952
      %954 = vmatprep.mubr.f32.mxu0 %v624
      %955 = vmatmul.mubr.f32.gmra.mrb[0].mxu0 %v623
      %v956 = vpop.f32.mrb[0].mxu0
      %v957 = vadd.f32 %v796, %v956
      %v958 = vpop.f32.mrb[0].mxu0
      %v959 = vadd.f32 %v798, %v958
      %960 = vdwg.mxu0
      %961 = vmatprep.subr.mxu0 %v468
      %962 = vmatpush1.msra.mxu0 %v467
      %963 = vmatprep.subr.mxu0 %v470
      %964 = vmatpush1.msra.mxu0 %v469
      %965 = vmatprep.subr.mxu0 %v472
      %966 = vmatpush1.msra.mxu0 %v471
      %967 = vmatprep.subr.mxu0 %v474
      %968 = vmatpush1.msra.mxu0 %v473
      %969 = vmatprep.subr.mxu0 %v476
      %970 = vmatpush1.msra.mxu0 %v475
      %971 = vmatprep.subr.mxu0 %v478
      %972 = vmatpush1.msra.mxu0 %v477
      %973 = vmatprep.subr.mxu0 %v480
      %974 = vmatpush1.msra.mxu0 %v479
      %975 = vmatprep.subr.mxu0 %v482
      %976 = vmatpush1.msra.mxu0 %v481
      %977 = vmatprep.subr.mxu0 %v484
      %978 = vmatpush1.msra.mxu0 %v483
      %979 = vmatprep.subr.mxu0 %v486
      %980 = vmatpush1.msra.mxu0 %v485
      %981 = vmatprep.subr.mxu0 %v488
      %982 = vmatpush1.msra.mxu0 %v487
      %983 = vmatprep.subr.mxu0 %v490
      %984 = vmatpush1.msra.mxu0 %v489
      %985 = vmatprep.subr.mxu0 %v492
      %986 = vmatpush1.msra.mxu0 %v491
      %987 = vmatprep.subr.mxu0 %v494
      %988 = vmatpush1.msra.mxu0 %v493
      %989 = vmatprep.subr.mxu0 %v496
      %990 = vmatpush1.msra.mxu0 %v495
      %991 = vmatprep.subr.mxu0 %v498
      %992 = vmatpush1.msra.mxu0 %v497
      %993 = vmatprep.subr.mxu0 %v500
      %994 = vmatpush1.msra.mxu0 %v499
      %995 = vmatprep.subr.mxu0 %v502
      %996 = vmatpush1.msra.mxu0 %v501
      %997 = vmatprep.subr.mxu0 %v504
      %998 = vmatpush1.msra.mxu0 %v503
      %999 = vmatprep.subr.mxu0 %v506
      %1000 = vmatpush1.msra.mxu0 %v505
      %1001 = vmatprep.subr.mxu0 %v508
      %1002 = vmatpush1.msra.mxu0 %v507
      %1003 = vmatprep.subr.mxu0 %v510
      %1004 = vmatpush1.msra.mxu0 %v509
      %1005 = vmatprep.subr.mxu0 %v512
      %1006 = vmatpush1.msra.mxu0 %v511
      %1007 = vmatprep.subr.mxu0 %v514
      %1008 = vmatpush1.msra.mxu0 %v513
      %1009 = vmatprep.subr.mxu0 %v516
      %1010 = vmatpush1.msra.mxu0 %v515
      %1011 = vmatprep.subr.mxu0 %v518
      %1012 = vmatpush1.msra.mxu0 %v517
      %1013 = vmatprep.subr.mxu0 %v520
      %1014 = vmatpush1.msra.mxu0 %v519
      %1015 = vmatprep.subr.mxu0 %v522
      %1016 = vmatpush1.msra.mxu0 %v521
      %1017 = vmatprep.subr.mxu0 %v524
      %1018 = vmatpush1.msra.mxu0 %v523
      %1019 = vmatprep.subr.mxu0 %v526
      %1020 = vmatpush1.msra.mxu0 %v525
      %1021 = vmatprep.subr.mxu0 %v528
      %1022 = vmatpush1.msra.mxu0 %v527
      %1023 = vmatprep.subr.mxu0 %v530
      %1024 = vmatpush1.msra.mxu0 %v529
      %1025 = vmatprep.mubr.f32.mxu0 %v536
      %1026 = vmatmul.mubr.f32.gmra.mrb[0].mxu0 %v535
      %v1027 = vpop.f32.mrb[0].mxu0
      %v1028 = vadd.f32 %v867, %v1027
      %v1029 = vpop.f32.mrb[0].mxu0
      %v1030 = vadd.f32 %v869, %v1029
      %1031 = vmatprep.mubr.f32.mxu0 %v542
      %1032 = vmatmul.mubr.f32.gmra.mrb[0].mxu0 %v541
      %v1033 = vpop.f32.mrb[0].mxu0
      %v1034 = vadd.f32 %v873, %v1033
      %v1035 = vpop.f32.mrb[0].mxu0
      %v1036 = vadd.f32 %v875, %v1035
      %1037 = vmatprep.mubr.f32.mxu0 %v548
      %1038 = vmatmul.mubr.f32.gmra.mrb[0].mxu0 %v547
      %v1039 = vpop.f32.mrb[0].mxu0
      %v1040 = vadd.f32 %v879, %v1039
      %v1041 = vpop.f32.mrb[0].mxu0
      %v1042 = vadd.f32 %v881, %v1041
      %1043 = vmatprep.mubr.f32.mxu0 %v554
      %1044 = vmatmul.mubr.f32.gmra.mrb[0].mxu0 %v553
      %v1045 = vpop.f32.mrb[0].mxu0
      %v1046 = vadd.f32 %v885, %v1045
      %v1047 = vpop.f32.mrb[0].mxu0
      %v1048 = vadd.f32 %v887, %v1047
      %1049 = vmatprep.mubr.f32.mxu0 %v560
      %1050 = vmatmul.mubr.f32.gmra.mrb[0].mxu0 %v559
      %v1051 = vpop.f32.mrb[0].mxu0
      %v1052 = vadd.f32 %v891, %v1051
      %v1053 = vpop.f32.mrb[0].mxu0
      %v1054 = vadd.f32 %v893, %v1053
      %1055 = vmatprep.mubr.f32.mxu0 %v566
      %1056 = vmatmul.mubr.f32.gmra.mrb[0].mxu0 %v565
      %v1057 = vpop.f32.mrb[0].mxu0
      %v1058 = vadd.f32 %v897, %v1057
      %v1059 = vpop.f32.mrb[0].mxu0
      %v1060 = vadd.f32 %v899, %v1059
      %1061 = vmatprep.mubr.f32.mxu0 %v572
      %1062 = vmatmul.mubr.f32.gmra.mrb[0].mxu0 %v571
      %v1063 = vpop.f32.mrb[0].mxu0
      %v1064 = vadd.f32 %v903, %v1063
      %v1065 = vpop.f32.mrb[0].mxu0
      %v1066 = vadd.f32 %v905, %v1065
      %1067 = vmatprep.mubr.f32.mxu0 %v578
      %1068 = vmatmul.mubr.f32.gmra.mrb[0].mxu0 %v577
      %v1069 = vpop.f32.mrb[0].mxu0
      %v1070 = vadd.f32 %v909, %v1069
      %v1071 = vpop.f32.mrb[0].mxu0
      %v1072 = vadd.f32 %v911, %v1071
      %1073 = vmatprep.mubr.f32.mxu0 %v584
      %1074 = vmatmul.mubr.f32.gmra.mrb[0].mxu0 %v583
      %v1075 = vpop.f32.mrb[0].mxu0
      %v1076 = vadd.f32 %v915, %v1075
      %v1077 = vpop.f32.mrb[0].mxu0
      %v1078 = vadd.f32 %v917, %v1077
      %1079 = vmatprep.mubr.f32.mxu0 %v590
      %1080 = vmatmul.mubr.f32.gmra.mrb[0].mxu0 %v589
      %v1081 = vpop.f32.mrb[0].mxu0
      %v1082 = vadd.f32 %v921, %v1081
      %v1083 = vpop.f32.mrb[0].mxu0
      %v1084 = vadd.f32 %v923, %v1083
      %1085 = vmatprep.mubr.f32.mxu0 %v596
      %1086 = vmatmul.mubr.f32.gmra.mrb[0].mxu0 %v595
      %v1087 = vpop.f32.mrb[0].mxu0
      %v1088 = vadd.f32 %v927, %v1087
      %v1089 = vpop.f32.mrb[0].mxu0
      %v1090 = vadd.f32 %v929, %v1089
      %1091 = vmatprep.mubr.f32.mxu0 %v602
      %1092 = vmatmul.mubr.f32.gmra.mrb[0].mxu0 %v601
      %v1093 = vpop.f32.mrb[0].mxu0
      %v1094 = vadd.f32 %v933, %v1093
      %v1095 = vpop.f32.mrb[0].mxu0
      %v1096 = vadd.f32 %v935, %v1095
      %1097 = vmatprep.mubr.f32.mxu0 %v608
      %1098 = vmatmul.mubr.f32.gmra.mrb[0].mxu0 %v607
      %v1099 = vpop.f32.mrb[0].mxu0
      %v1100 = vadd.f32 %v939, %v1099
      %v1101 = vpop.f32.mrb[0].mxu0
      %v1102 = vadd.f32 %v941, %v1101
      %1103 = vmatprep.mubr.f32.mxu0 %v614
      %1104 = vmatmul.mubr.f32.gmra.mrb[0].mxu0 %v613
      %v1105 = vpop.f32.mrb[0].mxu0
      %v1106 = vadd.f32 %v945, %v1105
      %v1107 = vpop.f32.mrb[0].mxu0
      %v1108 = vadd.f32 %v947, %v1107
      %1109 = vmatprep.mubr.f32.mxu0 %v620
      %1110 = vmatmul.mubr.f32.gmra.mrb[0].mxu0 %v619
      %v1111 = vpop.f32.mrb[0].mxu0
      %v1112 = vadd.f32 %v951, %v1111
      %v1113 = vpop.f32.mrb[0].mxu0
      %v1114 = vadd.f32 %v953, %v1113
      %1115 = vmatprep.mubr.f32.mxu0 %v626
      %1116 = vmatmul.mubr.f32.gmra.mrb[0].mxu0 %v625
      %v1117 = vpop.f32.mrb[0].mxu0
      %v1118 = vadd.f32 %v957, %v1117
      %v1119 = vpop.f32.mrb[0].mxu0
      %v1120 = vadd.f32 %v959, %v1119
      %1121 = vdwg.mxu0
      %v1122 = vmul.f32 %v1028, 0.01
      %v1123 = vmul.f32 %v1030, 0.01
      %v1124 = vmul.f32 %v1034, 0.01
      %v1125 = vmul.f32 %v1036, 0.01
      %v1126 = vmul.f32 %v1040, 0.01
      %v1127 = vmul.f32 %v1042, 0.01
      %v1128 = vmul.f32 %v1046, 0.01
      %v1129 = vmul.f32 %v1048, 0.01
      %v1130 = vmul.f32 %v1052, 0.01
      %v1131 = vmul.f32 %v1054, 0.01
      %v1132 = vmul.f32 %v1058, 0.01
      %v1133 = vmul.f32 %v1060, 0.01
      %v1134 = vmul.f32 %v1064, 0.01
      %v1135 = vmul.f32 %v1066, 0.01
      %v1136 = vmul.f32 %v1070, 0.01
      %v1137 = vmul.f32 %v1072, 0.01
      %v1138 = vmul.f32 %v1076, 0.01
      %v1139 = vmul.f32 %v1078, 0.01
      %v1140 = vmul.f32 %v1082, 0.01
      %v1141 = vmul.f32 %v1084, 0.01
      %v1142 = vmul.f32 %v1088, 0.01
      %v1143 = vmul.f32 %v1090, 0.01
      %v1144 = vmul.f32 %v1094, 0.01
      %v1145 = vmul.f32 %v1096, 0.01
      %v1146 = vmul.f32 %v1100, 0.01
      %v1147 = vmul.f32 %v1102, 0.01
      %v1148 = vmul.f32 %v1106, 0.01
      %v1149 = vmul.f32 %v1108, 0.01
      %v1150 = vmul.f32 %v1112, 0.01
      %v1151 = vmul.f32 %v1114, 0.01
      %v1152 = vmul.f32 %v1118, 0.01
      %v1153 = vmul.f32 %v1120, 0.01
      %v1154 = vmax.f32 %v1028, %v1122
      %v1155 = vmax.f32 %v1030, %v1123
      %v1156 = vmax.f32 %v1034, %v1124
      %v1157 = vmax.f32 %v1036, %v1125
      %v1158 = vmax.f32 %v1040, %v1126
      %v1159 = vmax.f32 %v1042, %v1127
      %v1160 = vmax.f32 %v1046, %v1128
      %v1161 = vmax.f32 %v1048, %v1129
      %v1162 = vmax.f32 %v1052, %v1130
      %v1163 = vmax.f32 %v1054, %v1131
      %v1164 = vmax.f32 %v1058, %v1132
      %v1165 = vmax.f32 %v1060, %v1133
      %v1166 = vmax.f32 %v1064, %v1134
      %v1167 = vmax.f32 %v1066, %v1135
      %v1168 = vmax.f32 %v1070, %v1136
      %v1169 = vmax.f32 %v1072, %v1137
      %v1170 = vmax.f32 %v1076, %v1138
      %v1171 = vmax.f32 %v1078, %v1139
      %v1172 = vmax.f32 %v1082, %v1140
      %v1173 = vmax.f32 %v1084, %v1141
      %v1174 = vmax.f32 %v1088, %v1142
      %v1175 = vmax.f32 %v1090, %v1143
      %v1176 = vmax.f32 %v1094, %v1144
      %v1177 = vmax.f32 %v1096, %v1145
      %v1178 = vmax.f32 %v1100, %v1146
      %v1179 = vmax.f32 %v1102, %v1147
      %v1180 = vmax.f32 %v1106, %v1148
      %v1181 = vmax.f32 %v1108, %v1149
      %v1182 = vmax.f32 %v1112, %v1150
      %v1183 = vmax.f32 %v1114, %v1151
      %v1184 = vmax.f32 %v1118, %v1152
      %v1185 = vmax.f32 %v1120, %v1153
      %v1186 = vld [vmem:[%s3] sm:$0xff]
      %v1187 = vld [vmem:[%s3 + $0x8] sm:$0xff]
      %v1188 = vld [vmem:[%s3 + $0x10] sm:$0xff]
      %v1189 = vld [vmem:[%s3 + $0x18] sm:$0xff]
      %v1190 = vld [vmem:[%s3 + $0x20] sm:$0xff]
      %v1191 = vld [vmem:[%s3 + $0x28] sm:$0xff]
      %v1192 = vld [vmem:[%s3 + $0x30] sm:$0xff]
      %v1193 = vld [vmem:[%s3 + $0x38] sm:$0xff]
      %v1194 = vld [vmem:[%s3 + $0x40] sm:$0xff]
      %v1195 = vld [vmem:[%s3 + $0x48] sm:$0xff]
      %v1196 = vld [vmem:[%s3 + $0x50] sm:$0xff]
      %v1197 = vld [vmem:[%s3 + $0x58] sm:$0xff]
      %v1198 = vld [vmem:[%s3 + $0x60] sm:$0xff]
      %v1199 = vld [vmem:[%s3 + $0x68] sm:$0xff]
      %v1200 = vld [vmem:[%s3 + $0x70] sm:$0xff]
      %v1201 = vld [vmem:[%s3 + $0x78] sm:$0xff]
      %v1202 = vld [vmem:[%s3 + $0x80] sm:$0xff]
      %v1203 = vld [vmem:[%s3 + $0x88] sm:$0xff]
      %v1204 = vld [vmem:[%s3 + $0x90] sm:$0xff]
      %v1205 = vld [vmem:[%s3 + $0x98] sm:$0xff]
      %v1206 = vld [vmem:[%s3 + $0xa0] sm:$0xff]
      %v1207 = vld [vmem:[%s3 + $0xa8] sm:$0xff]
      %v1208 = vld [vmem:[%s3 + $0xb0] sm:$0xff]
      %v1209 = vld [vmem:[%s3 + $0xb8] sm:$0xff]
      %v1210 = vld [vmem:[%s3 + $0xc0] sm:$0xff]
      %v1211 = vld [vmem:[%s3 + $0xc8] sm:$0xff]
      %v1212 = vld [vmem:[%s3 + $0xd0] sm:$0xff]
      %v1213 = vld [vmem:[%s3 + $0xd8] sm:$0xff]
      %v1214 = vld [vmem:[%s3 + $0xe0] sm:$0xff]
      %v1215 = vld [vmem:[%s3 + $0xe8] sm:$0xff]
      %v1216 = vld [vmem:[%s3 + $0xf0] sm:$0xff]
      %v1217 = vld [vmem:[%s3 + $0xf8] sm:$0xff]
      %v1218 = vld [vmem:[%s4] sm:$0x1]
      %v1220 = vlaneseq
      %v1221 = vshrl.u32 %v1220, 7
      %v1222 = vsub.s32 0, %v1221
      %v1223 = vrot.slane %v1218, %v1222
      %1225 = vmatprep.subr.mxu0 0.0
      %1226 = vmatpush1.msra.mxu0 %v1186
      %1227 = vmatprep.subr.mxu0 0.0
      %1228 = vmatpush1.msra.mxu0 %v1187
      %1229 = vmatprep.subr.mxu0 0.0
      %1230 = vmatpush1.msra.mxu0 %v1188
      %1231 = vmatprep.subr.mxu0 0.0
      %1232 = vmatpush1.msra.mxu0 %v1189
      %1233 = vmatprep.subr.mxu0 0.0
      %1234 = vmatpush1.msra.mxu0 %v1190
      %1235 = vmatprep.subr.mxu0 0.0
      %1236 = vmatpush1.msra.mxu0 %v1191
      %1237 = vmatprep.subr.mxu0 0.0
      %1238 = vmatpush1.msra.mxu0 %v1192
      %1239 = vmatprep.subr.mxu0 0.0
      %1240 = vmatpush1.msra.mxu0 %v1193
      %1241 = vmatprep.subr.mxu0 0.0
      %1242 = vmatpush1.msra.mxu0 %v1194
      %1243 = vmatprep.subr.mxu0 0.0
      %1244 = vmatpush1.msra.mxu0 %v1195
      %1245 = vmatprep.subr.mxu0 0.0
      %1246 = vmatpush1.msra.mxu0 %v1196
      %1247 = vmatprep.subr.mxu0 0.0
      %1248 = vmatpush1.msra.mxu0 %v1197
      %1249 = vmatprep.subr.mxu0 0.0
      %1250 = vmatpush1.msra.mxu0 %v1198
      %1251 = vmatprep.subr.mxu0 0.0
      %1252 = vmatpush1.msra.mxu0 %v1199
      %1253 = vmatprep.subr.mxu0 0.0
      %1254 = vmatpush1.msra.mxu0 %v1200
      %1255 = vmatprep.subr.mxu0 0.0
      %1256 = vmatpush1.msra.mxu0 %v1201
      %1257 = vmatprep.subr.mxu0 0.0
      %1258 = vmatpush1.msra.mxu0 %v1202
      %1259 = vmatprep.subr.mxu0 0.0
      %1260 = vmatpush1.msra.mxu0 %v1203
      %1261 = vmatprep.subr.mxu0 0.0
      %1262 = vmatpush1.msra.mxu0 %v1204
      %1263 = vmatprep.subr.mxu0 0.0
      %1264 = vmatpush1.msra.mxu0 %v1205
      %1265 = vmatprep.subr.mxu0 0.0
      %1266 = vmatpush1.msra.mxu0 %v1206
      %1267 = vmatprep.subr.mxu0 0.0
      %1268 = vmatpush1.msra.mxu0 %v1207
      %1269 = vmatprep.subr.mxu0 0.0
      %1270 = vmatpush1.msra.mxu0 %v1208
      %1271 = vmatprep.subr.mxu0 0.0
      %1272 = vmatpush1.msra.mxu0 %v1209
      %1273 = vmatprep.subr.mxu0 0.0
      %1274 = vmatpush1.msra.mxu0 %v1210
      %1275 = vmatprep.subr.mxu0 0.0
      %1276 = vmatpush1.msra.mxu0 %v1211
      %1277 = vmatprep.subr.mxu0 0.0
      %1278 = vmatpush1.msra.mxu0 %v1212
      %1279 = vmatprep.subr.mxu0 0.0
      %1280 = vmatpush1.msra.mxu0 %v1213
      %1281 = vmatprep.subr.mxu0 0.0
      %1282 = vmatpush1.msra.mxu0 %v1214
      %1283 = vmatprep.subr.mxu0 0.0
      %1284 = vmatpush1.msra.mxu0 %v1215
      %1285 = vmatprep.subr.mxu0 0.0
      %1286 = vmatpush1.msra.mxu0 %v1216
      %1287 = vmatprep.subr.mxu0 0.0
      %1288 = vmatpush1.msra.mxu0 %v1217
      %1289 = vmatprep.mubr.f32.mxu0 %v1155
      %1290 = vmatmul.mubr.f32.gmra.mrb[0].mxu0 %v1154
      %v1291 = vpop.f32.mrb[0].mxu0
      %v1292 = vadd.f32 %v1223, %v1291
      %v1293 = vpop.f32.mrb[0].mxu0
      %1294 = vmatprep.mubr.f32.mxu0 %v1157
      %1295 = vmatmul.mubr.f32.gmra.mrb[0].mxu0 %v1156
      %v1296 = vpop.f32.mrb[0].mxu0
      %v1297 = vadd.f32 %v1223, %v1296
      %v1298 = vpop.f32.mrb[0].mxu0
      %1299 = vmatprep.mubr.f32.mxu0 %v1159
      %1300 = vmatmul.mubr.f32.gmra.mrb[0].mxu0 %v1158
      %v1301 = vpop.f32.mrb[0].mxu0
      %v1302 = vadd.f32 %v1223, %v1301
      %v1303 = vpop.f32.mrb[0].mxu0
      %1304 = vmatprep.mubr.f32.mxu0 %v1161
      %1305 = vmatmul.mubr.f32.gmra.mrb[0].mxu0 %v1160
      %v1306 = vpop.f32.mrb[0].mxu0
      %v1307 = vadd.f32 %v1223, %v1306
      %v1308 = vpop.f32.mrb[0].mxu0
      %1309 = vmatprep.mubr.f32.mxu0 %v1163
      %1310 = vmatmul.mubr.f32.gmra.mrb[0].mxu0 %v1162
      %v1311 = vpop.f32.mrb[0].mxu0
      %v1312 = vadd.f32 %v1223, %v1311
      %v1313 = vpop.f32.mrb[0].mxu0
      %1314 = vmatprep.mubr.f32.mxu0 %v1165
      %1315 = vmatmul.mubr.f32.gmra.mrb[0].mxu0 %v1164
      %v1316 = vpop.f32.mrb[0].mxu0
      %v1317 = vadd.f32 %v1223, %v1316
      %v1318 = vpop.f32.mrb[0].mxu0
      %1319 = vmatprep.mubr.f32.mxu0 %v1167
      %1320 = vmatmul.mubr.f32.gmra.mrb[0].mxu0 %v1166
      %v1321 = vpop.f32.mrb[0].mxu0
      %v1322 = vadd.f32 %v1223, %v1321
      %v1323 = vpop.f32.mrb[0].mxu0
      %1324 = vmatprep.mubr.f32.mxu0 %v1169
      %1325 = vmatmul.mubr.f32.gmra.mrb[0].mxu0 %v1168
      %v1326 = vpop.f32.mrb[0].mxu0
      %v1327 = vadd.f32 %v1223, %v1326
      %v1328 = vpop.f32.mrb[0].mxu0
      %1329 = vmatprep.mubr.f32.mxu0 %v1171
      %1330 = vmatmul.mubr.f32.gmra.mrb[0].mxu0 %v1170
      %v1331 = vpop.f32.mrb[0].mxu0
      %v1332 = vadd.f32 %v1223, %v1331
      %v1333 = vpop.f32.mrb[0].mxu0
      %1334 = vmatprep.mubr.f32.mxu0 %v1173
      %1335 = vmatmul.mubr.f32.gmra.mrb[0].mxu0 %v1172
      %v1336 = vpop.f32.mrb[0].mxu0
      %v1337 = vadd.f32 %v1223, %v1336
      %v1338 = vpop.f32.mrb[0].mxu0
      %1339 = vmatprep.mubr.f32.mxu0 %v1175
      %1340 = vmatmul.mubr.f32.gmra.mrb[0].mxu0 %v1174
      %v1341 = vpop.f32.mrb[0].mxu0
      %v1342 = vadd.f32 %v1223, %v1341
      %v1343 = vpop.f32.mrb[0].mxu0
      %1344 = vmatprep.mubr.f32.mxu0 %v1177
      %1345 = vmatmul.mubr.f32.gmra.mrb[0].mxu0 %v1176
      %v1346 = vpop.f32.mrb[0].mxu0
      %v1347 = vadd.f32 %v1223, %v1346
      %v1348 = vpop.f32.mrb[0].mxu0
      %1349 = vmatprep.mubr.f32.mxu0 %v1179
      %1350 = vmatmul.mubr.f32.gmra.mrb[0].mxu0 %v1178
      %v1351 = vpop.f32.mrb[0].mxu0
      %v1352 = vadd.f32 %v1223, %v1351
      %v1353 = vpop.f32.mrb[0].mxu0
      %1354 = vmatprep.mubr.f32.mxu0 %v1181
      %1355 = vmatmul.mubr.f32.gmra.mrb[0].mxu0 %v1180
      %v1356 = vpop.f32.mrb[0].mxu0
      %v1357 = vadd.f32 %v1223, %v1356
      %v1358 = vpop.f32.mrb[0].mxu0
      %1359 = vmatprep.mubr.f32.mxu0 %v1183
      %1360 = vmatmul.mubr.f32.gmra.mrb[0].mxu0 %v1182
      %v1361 = vpop.f32.mrb[0].mxu0
      %v1362 = vadd.f32 %v1223, %v1361
      %v1363 = vpop.f32.mrb[0].mxu0
      %1364 = vmatprep.mubr.f32.mxu0 %v1185
      %1365 = vmatmul.mubr.f32.gmra.mrb[0].mxu0 %v1184
      %v1366 = vpop.f32.mrb[0].mxu0
      %v1367 = vadd.f32 %v1223, %v1366
      %v1368 = vpop.f32.mrb[0].mxu0
      %1369 = vdwg.mxu0
      %v1370 = vmul.f32 %v1292, 0.01
      %v1371 = vmul.f32 %v1297, 0.01
      %v1372 = vmul.f32 %v1302, 0.01
      %v1373 = vmul.f32 %v1307, 0.01
      %v1374 = vmul.f32 %v1312, 0.01
      %v1375 = vmul.f32 %v1317, 0.01
      %v1376 = vmul.f32 %v1322, 0.01
      %v1377 = vmul.f32 %v1327, 0.01
      %v1378 = vmul.f32 %v1332, 0.01
      %v1379 = vmul.f32 %v1337, 0.01
      %v1380 = vmul.f32 %v1342, 0.01
      %v1381 = vmul.f32 %v1347, 0.01
      %v1382 = vmul.f32 %v1352, 0.01
      %v1383 = vmul.f32 %v1357, 0.01
      %v1384 = vmul.f32 %v1362, 0.01
      %v1385 = vmul.f32 %v1367, 0.01
      %v1386 = vmax.f32 %v1292, %v1370
      %v1387 = vmax.f32 %v1297, %v1371
      %v1388 = vmax.f32 %v1302, %v1372
      %v1389 = vmax.f32 %v1307, %v1373
      %v1390 = vmax.f32 %v1312, %v1374
      %v1391 = vmax.f32 %v1317, %v1375
      %v1392 = vmax.f32 %v1322, %v1376
      %v1393 = vmax.f32 %v1327, %v1377
      %v1394 = vmax.f32 %v1332, %v1378
      %v1395 = vmax.f32 %v1337, %v1379
      %v1396 = vmax.f32 %v1342, %v1380
      %v1397 = vmax.f32 %v1347, %v1381
      %v1398 = vmax.f32 %v1352, %v1382
      %v1399 = vmax.f32 %v1357, %v1383
      %v1400 = vmax.f32 %v1362, %v1384
      %v1401 = vmax.f32 %v1367, %v1385
      %v1402 = vld [vmem:[%s5] sm:$0xff]
      %v1403 = vld [vmem:[%s5 + $0x8] sm:$0xff]
      %v1404 = vld [vmem:[%s5 + $0x10] sm:$0xff]
      %v1405 = vld [vmem:[%s5 + $0x18] sm:$0xff]
      %v1406 = vld [vmem:[%s5 + $0x20] sm:$0xff]
      %v1407 = vld [vmem:[%s5 + $0x28] sm:$0xff]
      %v1408 = vld [vmem:[%s5 + $0x30] sm:$0xff]
      %v1409 = vld [vmem:[%s5 + $0x38] sm:$0xff]
      %v1410 = vld [vmem:[%s5 + $0x40] sm:$0xff]
      %v1411 = vld [vmem:[%s5 + $0x48] sm:$0xff]
      %v1412 = vld [vmem:[%s5 + $0x50] sm:$0xff]
      %v1413 = vld [vmem:[%s5 + $0x58] sm:$0xff]
      %v1414 = vld [vmem:[%s5 + $0x60] sm:$0xff]
      %v1415 = vld [vmem:[%s5 + $0x68] sm:$0xff]
      %v1416 = vld [vmem:[%s5 + $0x70] sm:$0xff]
      %v1417 = vld [vmem:[%s5 + $0x78] sm:$0xff]
      %v1418 = vld [vmem:[%s6] sm:$0x1]
      %v1420 = vlaneseq
      %v1421 = vshrl.u32 %v1420, 7
      %v1422 = vsub.s32 0, %v1421
      %v1423 = vrot.slane %v1418, %v1422
      %1425 = vmatprep.subr.mxu0 0.0
      %1426 = vmatpush1.msra.mxu0 %v1402
      %1427 = vmatprep.subr.mxu0 0.0
      %1428 = vmatpush1.msra.mxu0 %v1403
      %1429 = vmatprep.subr.mxu0 0.0
      %1430 = vmatpush1.msra.mxu0 %v1404
      %1431 = vmatprep.subr.mxu0 0.0
      %1432 = vmatpush1.msra.mxu0 %v1405
      %1433 = vmatprep.subr.mxu0 0.0
      %1434 = vmatpush1.msra.mxu0 %v1406
      %1435 = vmatprep.subr.mxu0 0.0
      %1436 = vmatpush1.msra.mxu0 %v1407
      %1437 = vmatprep.subr.mxu0 0.0
      %1438 = vmatpush1.msra.mxu0 %v1408
      %1439 = vmatprep.subr.mxu0 0.0
      %1440 = vmatpush1.msra.mxu0 %v1409
      %1441 = vmatprep.subr.mxu0 0.0
      %1442 = vmatpush1.msra.mxu0 %v1410
      %1443 = vmatprep.subr.mxu0 0.0
      %1444 = vmatpush1.msra.mxu0 %v1411
      %1445 = vmatprep.subr.mxu0 0.0
      %1446 = vmatpush1.msra.mxu0 %v1412
      %1447 = vmatprep.subr.mxu0 0.0
      %1448 = vmatpush1.msra.mxu0 %v1413
      %1449 = vmatprep.subr.mxu0 0.0
      %1450 = vmatpush1.msra.mxu0 %v1414
      %1451 = vmatprep.subr.mxu0 0.0
      %1452 = vmatpush1.msra.mxu0 %v1415
      %1453 = vmatprep.subr.mxu0 0.0
      %1454 = vmatpush1.msra.mxu0 %v1416
      %1455 = vmatprep.subr.mxu0 0.0
      %1456 = vmatpush1.msra.mxu0 %v1417
      %1457 = vmatprep.subr.mxu0 0.0
      %1458 = vmatpush1.msra.mxu0 0.0
      %1459 = vmatprep.subr.mxu0 0.0
      %1460 = vmatpush1.msra.mxu0 0.0
      %1461 = vmatprep.subr.mxu0 0.0
      %1462 = vmatpush1.msra.mxu0 0.0
      %1463 = vmatprep.subr.mxu0 0.0
      %1464 = vmatpush1.msra.mxu0 0.0
      %1465 = vmatprep.subr.mxu0 0.0
      %1466 = vmatpush1.msra.mxu0 0.0
      %1467 = vmatprep.subr.mxu0 0.0
      %1468 = vmatpush1.msra.mxu0 0.0
      %1469 = vmatprep.subr.mxu0 0.0
      %1470 = vmatpush1.msra.mxu0 0.0
      %1471 = vmatprep.subr.mxu0 0.0
      %1472 = vmatpush1.msra.mxu0 0.0
      %1473 = vmatprep.subr.mxu0 0.0
      %1474 = vmatpush1.msra.mxu0 0.0
      %1475 = vmatprep.subr.mxu0 0.0
      %1476 = vmatpush1.msra.mxu0 0.0
      %1477 = vmatprep.subr.mxu0 0.0
      %1478 = vmatpush1.msra.mxu0 0.0
      %1479 = vmatprep.subr.mxu0 0.0
      %1480 = vmatpush1.msra.mxu0 0.0
      %1481 = vmatprep.subr.mxu0 0.0
      %1482 = vmatpush1.msra.mxu0 0.0
      %1483 = vmatprep.subr.mxu0 0.0
      %1484 = vmatpush1.msra.mxu0 0.0
      %1485 = vmatprep.subr.mxu0 0.0
      %1486 = vmatpush1.msra.mxu0 0.0
      %1487 = vmatprep.subr.mxu0 0.0
      %1488 = vmatpush1.msra.mxu0 0.0
      %1489 = vmatprep.mubr.f32.mxu0 0.0
      %1490 = vmatmul.mubr.f32.gmra.mrb[0].mxu0 %v1386
      %v1491 = vpop.f32.mrb[0].mxu0
      %v1492 = vadd.f32 %v1423, %v1491
      %v1493 = vpop.f32.mrb[0].mxu0
      %1494 = vmatprep.mubr.f32.mxu0 0.0
      %1495 = vmatmul.mubr.f32.gmra.mrb[0].mxu0 %v1387
      %v1496 = vpop.f32.mrb[0].mxu0
      %v1497 = vadd.f32 %v1423, %v1496
      %v1498 = vpop.f32.mrb[0].mxu0
      %1499 = vmatprep.mubr.f32.mxu0 0.0
      %1500 = vmatmul.mubr.f32.gmra.mrb[0].mxu0 %v1388
      %v1501 = vpop.f32.mrb[0].mxu0
      %v1502 = vadd.f32 %v1423, %v1501
      %v1503 = vpop.f32.mrb[0].mxu0
      %1504 = vmatprep.mubr.f32.mxu0 0.0
      %1505 = vmatmul.mubr.f32.gmra.mrb[0].mxu0 %v1389
      %v1506 = vpop.f32.mrb[0].mxu0
      %v1507 = vadd.f32 %v1423, %v1506
      %v1508 = vpop.f32.mrb[0].mxu0
      %1509 = vmatprep.mubr.f32.mxu0 0.0
      %1510 = vmatmul.mubr.f32.gmra.mrb[0].mxu0 %v1390
      %v1511 = vpop.f32.mrb[0].mxu0
      %v1512 = vadd.f32 %v1423, %v1511
      %v1513 = vpop.f32.mrb[0].mxu0
      %1514 = vmatprep.mubr.f32.mxu0 0.0
      %1515 = vmatmul.mubr.f32.gmra.mrb[0].mxu0 %v1391
      %v1516 = vpop.f32.mrb[0].mxu0
      %v1517 = vadd.f32 %v1423, %v1516
      %v1518 = vpop.f32.mrb[0].mxu0
      %1519 = vmatprep.mubr.f32.mxu0 0.0
      %1520 = vmatmul.mubr.f32.gmra.mrb[0].mxu0 %v1392
      %v1521 = vpop.f32.mrb[0].mxu0
      %v1522 = vadd.f32 %v1423, %v1521
      %v1523 = vpop.f32.mrb[0].mxu0
      %1524 = vmatprep.mubr.f32.mxu0 0.0
      %1525 = vmatmul.mubr.f32.gmra.mrb[0].mxu0 %v1393
      %v1526 = vpop.f32.mrb[0].mxu0
      %v1527 = vadd.f32 %v1423, %v1526
      %v1528 = vpop.f32.mrb[0].mxu0
      %1529 = vmatprep.mubr.f32.mxu0 0.0
      %1530 = vmatmul.mubr.f32.gmra.mrb[0].mxu0 %v1394
      %v1531 = vpop.f32.mrb[0].mxu0
      %v1532 = vadd.f32 %v1423, %v1531
      %v1533 = vpop.f32.mrb[0].mxu0
      %1534 = vmatprep.mubr.f32.mxu0 0.0
      %1535 = vmatmul.mubr.f32.gmra.mrb[0].mxu0 %v1395
      %v1536 = vpop.f32.mrb[0].mxu0
      %v1537 = vadd.f32 %v1423, %v1536
      %v1538 = vpop.f32.mrb[0].mxu0
      %1539 = vmatprep.mubr.f32.mxu0 0.0
      %1540 = vmatmul.mubr.f32.gmra.mrb[0].mxu0 %v1396
      %v1541 = vpop.f32.mrb[0].mxu0
      %v1542 = vadd.f32 %v1423, %v1541
      %v1543 = vpop.f32.mrb[0].mxu0
      %1544 = vmatprep.mubr.f32.mxu0 0.0
      %1545 = vmatmul.mubr.f32.gmra.mrb[0].mxu0 %v1397
      %v1546 = vpop.f32.mrb[0].mxu0
      %v1547 = vadd.f32 %v1423, %v1546
      %v1548 = vpop.f32.mrb[0].mxu0
      %1549 = vmatprep.mubr.f32.mxu0 0.0
      %1550 = vmatmul.mubr.f32.gmra.mrb[0].mxu0 %v1398
      %v1551 = vpop.f32.mrb[0].mxu0
      %v1552 = vadd.f32 %v1423, %v1551
      %v1553 = vpop.f32.mrb[0].mxu0
      %1554 = vmatprep.mubr.f32.mxu0 0.0
      %1555 = vmatmul.mubr.f32.gmra.mrb[0].mxu0 %v1399
      %v1556 = vpop.f32.mrb[0].mxu0
      %v1557 = vadd.f32 %v1423, %v1556
      %v1558 = vpop.f32.mrb[0].mxu0
      %1559 = vmatprep.mubr.f32.mxu0 0.0
      %1560 = vmatmul.mubr.f32.gmra.mrb[0].mxu0 %v1400
      %v1561 = vpop.f32.mrb[0].mxu0
      %v1562 = vadd.f32 %v1423, %v1561
      %v1563 = vpop.f32.mrb[0].mxu0
      %1564 = vmatprep.mubr.f32.mxu0 0.0
      %1565 = vmatmul.mubr.f32.gmra.mrb[0].mxu0 %v1401
      %v1566 = vpop.f32.mrb[0].mxu0
      %v1567 = vadd.f32 %v1423, %v1566
      %v1568 = vpop.f32.mrb[0].mxu0
      %1569 = vdwg.mxu0
      %v1570 = vmul.f32 %v1492, 0.01
      %v1571 = vmul.f32 %v1497, 0.01
      %v1572 = vmul.f32 %v1502, 0.01
      %v1573 = vmul.f32 %v1507, 0.01
      %v1574 = vmul.f32 %v1512, 0.01
      %v1575 = vmul.f32 %v1517, 0.01
      %v1576 = vmul.f32 %v1522, 0.01
      %v1577 = vmul.f32 %v1527, 0.01
      %v1578 = vmul.f32 %v1532, 0.01
      %v1579 = vmul.f32 %v1537, 0.01
      %v1580 = vmul.f32 %v1542, 0.01
      %v1581 = vmul.f32 %v1547, 0.01
      %v1582 = vmul.f32 %v1552, 0.01
      %v1583 = vmul.f32 %v1557, 0.01
      %v1584 = vmul.f32 %v1562, 0.01
      %v1585 = vmul.f32 %v1567, 0.01
      %v1586 = vmax.f32 %v1492, %v1570
      %v1587 = vmax.f32 %v1497, %v1571
      %v1588 = vmax.f32 %v1502, %v1572
      %v1589 = vmax.f32 %v1507, %v1573
      %v1590 = vmax.f32 %v1512, %v1574
      %v1591 = vmax.f32 %v1517, %v1575
      %v1592 = vmax.f32 %v1522, %v1576
      %v1593 = vmax.f32 %v1527, %v1577
      %v1594 = vmax.f32 %v1532, %v1578
      %v1595 = vmax.f32 %v1537, %v1579
      %v1596 = vmax.f32 %v1542, %v1580
      %v1597 = vmax.f32 %v1547, %v1581
      %v1598 = vmax.f32 %v1552, %v1582
      %v1599 = vmax.f32 %v1557, %v1583
      %v1600 = vmax.f32 %v1562, %v1584
      %v1601 = vmax.f32 %v1567, %v1585
      %v1602 = vld [vmem:[%s7] sm:$0xff]
      %v1603 = vld [vmem:[%s7 + $0x8] sm:$0xff]
      %v1604 = vld [vmem:[%s7 + $0x10] sm:$0xff]
      %v1605 = vld [vmem:[%s7 + $0x18] sm:$0xff]
      %v1606 = vld [vmem:[%s7 + $0x20] sm:$0xff]
      %v1607 = vld [vmem:[%s7 + $0x28] sm:$0xff]
      %v1608 = vld [vmem:[%s7 + $0x30] sm:$0xff]
      %v1609 = vld [vmem:[%s7 + $0x38] sm:$0xff]
      %v1610 = vld [vmem:[%s7 + $0x40] sm:$0xff]
      %v1611 = vld [vmem:[%s7 + $0x48] sm:$0xff]
      %v1612 = vld [vmem:[%s7 + $0x50] sm:$0xff]
      %v1613 = vld [vmem:[%s7 + $0x58] sm:$0xff]
      %v1614 = vld [vmem:[%s7 + $0x60] sm:$0xff]
      %v1615 = vld [vmem:[%s7 + $0x68] sm:$0xff]
      %v1616 = vld [vmem:[%s7 + $0x70] sm:$0xff]
      %v1617 = vld [vmem:[%s7 + $0x78] sm:$0xff]
      %v1618 = vld [vmem:[%s8] sm:$0x1]
      %v1620 = vlaneseq
      %v1621 = vshrl.u32 %v1620, 7
      %v1622 = vsub.s32 0, %v1621
      %v1623 = vrot.slane %v1618, %v1622
      %1625 = vmatprep.subr.mxu0 0.0
      %1626 = vmatpush1.msra.mxu0 %v1602
      %1627 = vmatprep.subr.mxu0 0.0
      %1628 = vmatpush1.msra.mxu0 %v1603
      %1629 = vmatprep.subr.mxu0 0.0
      %1630 = vmatpush1.msra.mxu0 %v1604
      %1631 = vmatprep.subr.mxu0 0.0
      %1632 = vmatpush1.msra.mxu0 %v1605
      %1633 = vmatprep.subr.mxu0 0.0
      %1634 = vmatpush1.msra.mxu0 %v1606
      %1635 = vmatprep.subr.mxu0 0.0
      %1636 = vmatpush1.msra.mxu0 %v1607
      %1637 = vmatprep.subr.mxu0 0.0
      %1638 = vmatpush1.msra.mxu0 %v1608
      %1639 = vmatprep.subr.mxu0 0.0
      %1640 = vmatpush1.msra.mxu0 %v1609
      %1641 = vmatprep.subr.mxu0 0.0
      %1642 = vmatpush1.msra.mxu0 %v1610
      %1643 = vmatprep.subr.mxu0 0.0
      %1644 = vmatpush1.msra.mxu0 %v1611
      %1645 = vmatprep.subr.mxu0 0.0
      %1646 = vmatpush1.msra.mxu0 %v1612
      %1647 = vmatprep.subr.mxu0 0.0
      %1648 = vmatpush1.msra.mxu0 %v1613
      %1649 = vmatprep.subr.mxu0 0.0
      %1650 = vmatpush1.msra.mxu0 %v1614
      %1651 = vmatprep.subr.mxu0 0.0
      %1652 = vmatpush1.msra.mxu0 %v1615
      %1653 = vmatprep.subr.mxu0 0.0
      %1654 = vmatpush1.msra.mxu0 %v1616
      %1655 = vmatprep.subr.mxu0 0.0
      %1656 = vmatpush1.msra.mxu0 %v1617
      %1657 = vmatprep.subr.mxu0 0.0
      %1658 = vmatpush1.msra.mxu0 0.0
      %1659 = vmatprep.subr.mxu0 0.0
      %1660 = vmatpush1.msra.mxu0 0.0
      %1661 = vmatprep.subr.mxu0 0.0
      %1662 = vmatpush1.msra.mxu0 0.0
      %1663 = vmatprep.subr.mxu0 0.0
      %1664 = vmatpush1.msra.mxu0 0.0
      %1665 = vmatprep.subr.mxu0 0.0
      %1666 = vmatpush1.msra.mxu0 0.0
      %1667 = vmatprep.subr.mxu0 0.0
      %1668 = vmatpush1.msra.mxu0 0.0
      %1669 = vmatprep.subr.mxu0 0.0
      %1670 = vmatpush1.msra.mxu0 0.0
      %1671 = vmatprep.subr.mxu0 0.0
      %1672 = vmatpush1.msra.mxu0 0.0
      %1673 = vmatprep.subr.mxu0 0.0
      %1674 = vmatpush1.msra.mxu0 0.0
      %1675 = vmatprep.subr.mxu0 0.0
      %1676 = vmatpush1.msra.mxu0 0.0
      %1677 = vmatprep.subr.mxu0 0.0
      %1678 = vmatpush1.msra.mxu0 0.0
      %1679 = vmatprep.subr.mxu0 0.0
      %1680 = vmatpush1.msra.mxu0 0.0
      %1681 = vmatprep.subr.mxu0 0.0
      %1682 = vmatpush1.msra.mxu0 0.0
      %1683 = vmatprep.subr.mxu0 0.0
      %1684 = vmatpush1.msra.mxu0 0.0
      %1685 = vmatprep.subr.mxu0 0.0
      %1686 = vmatpush1.msra.mxu0 0.0
      %1687 = vmatprep.subr.mxu0 0.0
      %1688 = vmatpush1.msra.mxu0 0.0
      %1689 = vmatprep.mubr.f32.mxu0 0.0
      %1690 = vmatmul.mubr.f32.gmra.mrb[0].mxu0 %v1586
      %v1691 = vpop.f32.mrb[0].mxu0
      %v1692 = vadd.f32 %v1623, %v1691
      %v1693 = vpop.f32.mrb[0].mxu0
      %1694 = vmatprep.mubr.f32.mxu0 0.0
      %1695 = vmatmul.mubr.f32.gmra.mrb[0].mxu0 %v1587
      %v1696 = vpop.f32.mrb[0].mxu0
      %v1697 = vadd.f32 %v1623, %v1696
      %v1698 = vpop.f32.mrb[0].mxu0
      %1699 = vmatprep.mubr.f32.mxu0 0.0
      %1700 = vmatmul.mubr.f32.gmra.mrb[0].mxu0 %v1588
      %v1701 = vpop.f32.mrb[0].mxu0
      %v1702 = vadd.f32 %v1623, %v1701
      %v1703 = vpop.f32.mrb[0].mxu0
      %1704 = vmatprep.mubr.f32.mxu0 0.0
      %1705 = vmatmul.mubr.f32.gmra.mrb[0].mxu0 %v1589
      %v1706 = vpop.f32.mrb[0].mxu0
      %v1707 = vadd.f32 %v1623, %v1706
      %v1708 = vpop.f32.mrb[0].mxu0
      %1709 = vmatprep.mubr.f32.mxu0 0.0
      %1710 = vmatmul.mubr.f32.gmra.mrb[0].mxu0 %v1590
      %v1711 = vpop.f32.mrb[0].mxu0
      %v1712 = vadd.f32 %v1623, %v1711
      %v1713 = vpop.f32.mrb[0].mxu0
      %1714 = vmatprep.mubr.f32.mxu0 0.0
      %1715 = vmatmul.mubr.f32.gmra.mrb[0].mxu0 %v1591
      %v1716 = vpop.f32.mrb[0].mxu0
      %v1717 = vadd.f32 %v1623, %v1716
      %v1718 = vpop.f32.mrb[0].mxu0
      %1719 = vmatprep.mubr.f32.mxu0 0.0
      %1720 = vmatmul.mubr.f32.gmra.mrb[0].mxu0 %v1592
      %v1721 = vpop.f32.mrb[0].mxu0
      %v1722 = vadd.f32 %v1623, %v1721
      %v1723 = vpop.f32.mrb[0].mxu0
      %1724 = vmatprep.mubr.f32.mxu0 0.0
      %1725 = vmatmul.mubr.f32.gmra.mrb[0].mxu0 %v1593
      %v1726 = vpop.f32.mrb[0].mxu0
      %v1727 = vadd.f32 %v1623, %v1726
      %v1728 = vpop.f32.mrb[0].mxu0
      %1729 = vmatprep.mubr.f32.mxu0 0.0
      %1730 = vmatmul.mubr.f32.gmra.mrb[0].mxu0 %v1594
      %v1731 = vpop.f32.mrb[0].mxu0
      %v1732 = vadd.f32 %v1623, %v1731
      %v1733 = vpop.f32.mrb[0].mxu0
      %1734 = vmatprep.mubr.f32.mxu0 0.0
      %1735 = vmatmul.mubr.f32.gmra.mrb[0].mxu0 %v1595
      %v1736 = vpop.f32.mrb[0].mxu0
      %v1737 = vadd.f32 %v1623, %v1736
      %v1738 = vpop.f32.mrb[0].mxu0
      %1739 = vmatprep.mubr.f32.mxu0 0.0
      %1740 = vmatmul.mubr.f32.gmra.mrb[0].mxu0 %v1596
      %v1741 = vpop.f32.mrb[0].mxu0
      %v1742 = vadd.f32 %v1623, %v1741
      %v1743 = vpop.f32.mrb[0].mxu0
      %1744 = vmatprep.mubr.f32.mxu0 0.0
      %1745 = vmatmul.mubr.f32.gmra.mrb[0].mxu0 %v1597
      %v1746 = vpop.f32.mrb[0].mxu0
      %v1747 = vadd.f32 %v1623, %v1746
      %v1748 = vpop.f32.mrb[0].mxu0
      %1749 = vmatprep.mubr.f32.mxu0 0.0
      %1750 = vmatmul.mubr.f32.gmra.mrb[0].mxu0 %v1598
      %v1751 = vpop.f32.mrb[0].mxu0
      %v1752 = vadd.f32 %v1623, %v1751
      %v1753 = vpop.f32.mrb[0].mxu0
      %1754 = vmatprep.mubr.f32.mxu0 0.0
      %1755 = vmatmul.mubr.f32.gmra.mrb[0].mxu0 %v1599
      %v1756 = vpop.f32.mrb[0].mxu0
      %v1757 = vadd.f32 %v1623, %v1756
      %v1758 = vpop.f32.mrb[0].mxu0
      %1759 = vmatprep.mubr.f32.mxu0 0.0
      %1760 = vmatmul.mubr.f32.gmra.mrb[0].mxu0 %v1600
      %v1761 = vpop.f32.mrb[0].mxu0
      %v1762 = vadd.f32 %v1623, %v1761
      %v1763 = vpop.f32.mrb[0].mxu0
      %1764 = vmatprep.mubr.f32.mxu0 0.0
      %1765 = vmatmul.mubr.f32.gmra.mrb[0].mxu0 %v1601
      %v1766 = vpop.f32.mrb[0].mxu0
      %v1767 = vadd.f32 %v1623, %v1766
      %v1768 = vpop.f32.mrb[0].mxu0
      %1769 = vdwg.mxu0
      %1770 = vst [vmem:[%s337] sm:$0xff] %v1692
      %1771 = vst [vmem:[%s337 + $0x8] sm:$0xff] %v1697
      %1772 = vst [vmem:[%s337 + $0x10] sm:$0xff] %v1702
      %1773 = vst [vmem:[%s337 + $0x18] sm:$0xff] %v1707
      %1774 = vst [vmem:[%s337 + $0x20] sm:$0xff] %v1712
      %1775 = vst [vmem:[%s337 + $0x28] sm:$0xff] %v1717
      %1776 = vst [vmem:[%s337 + $0x30] sm:$0xff] %v1722
      %1777 = vst [vmem:[%s337 + $0x38] sm:$0xff] %v1727
      %1778 = vst [vmem:[%s337 + $0x40] sm:$0xff] %v1732
      %1779 = vst [vmem:[%s337 + $0x48] sm:$0xff] %v1737
      %1780 = vst [vmem:[%s337 + $0x50] sm:$0xff] %v1742
      %1781 = vst [vmem:[%s337 + $0x58] sm:$0xff] %v1747
      %1782 = vst [vmem:[%s337 + $0x60] sm:$0xff] %v1752
      %1783 = vst [vmem:[%s337 + $0x68] sm:$0xff] %v1757
      %1784 = vst [vmem:[%s337 + $0x70] sm:$0xff] %v1762
      %1785 = vst [vmem:[%s337 + $0x78] sm:$0xff] %v1767
      %s1786 = smul.u32 16, %s20
      %p1787 = scmp.lt.s32.totalorder %s1786, 31
      %s1788 = scalar_select %p1787, %s1786, 31
      %s1789 = smul.addr %s1788, 8
      %s1790 = scalar_lea.vmem %s9, %s1789
      // Predicated region
      $region57: #{improved_eight_class_forward.1} parent=55 // pred_check
        %p1791 = pneg %p232
      $region58: #{improved_eight_class_forward.1} parent=55 // pred_check_branch
        %1793 = sbr.rel (%p1791) target = $region60
      $region59: #{improved_eight_class_forward.1} parent=55 // pred_region
        %s1794 = smul.u32 16, %s20
      $region60: #{improved_eight_class_forward.1} parent=55 // pred_fallthru
        _
    $region56: #{improved_eight_class_forward.1} parent=5 // pred_fallthru
      _
    %p1795 = scmp.le.s32.totalorder 2, %s15
    // Predicated region
    $region61: #{improved_eight_class_forward.1} parent=5 // pred_check
      %p1796 = pneg %p1795
    $region62: #{improved_eight_class_forward.1} parent=5 // pred_check_branch
      %1798 = sbr.rel (%p1796) target = $region64
    $region63: #{improved_eight_class_forward.1} parent=5 // pred_region
      %s1799 = ssub.s32 %s15, 2
      // Predicated region
      $region65: #{improved_eight_class_forward.1} parent=63 // pred_check
        %p1800 = pneg %p238
      $region66: #{improved_eight_class_forward.1} parent=63 // pred_check_branch
        %1802 = sbr.rel (%p1800) target = $region68
      $region67: #{improved_eight_class_forward.1} parent=63 // pred_region
        %s1803 = smul.u32 16, %s21
        %p1804 = scmp.lt.s32.totalorder %s1803, 31
        %s1805 = scalar_select %p1804, %s1803, 31
        %s1806 = smul.addr %s1805, 8
        %s1807 = scalar_lea.vmem %s9, %s1806
      $region68: #{improved_eight_class_forward.1} parent=63 // pred_fallthru
        _
    $region64: #{improved_eight_class_forward.1} parent=5 // pred_fallthru
      _
  $region6: #{improved_eight_class_forward.1} parent=0 // loop_footer
    %s19 = sadd.s32 1, %s15
  $region7: #{improved_eight_class_forward.1} parent=0 // loop_footer_branch
    %14 = sbr.rel target = $region3
  $region8: #{improved_eight_class_forward.1} parent=0 // loop_exit
    _

</llo_original>
